<compile_context>
chip_gen: v7x
topology: tpu7x:2x2x1
jax: 0.10.0
libtpu: 0.0.40
codegen_flags: <defaults>
</compile_context>

<pallas_src>
from functools import partial

import numpy as np
import jax
import jax.numpy as jnp
from jax.experimental import pallas as pl
from jax.experimental.pallas import tpu as pltpu

_EPS = 1e-5


def _round_up(x, m):
    return (x + m - 1) // m * m


def _pick_chunk(L1):
    """Rows of u0/u1 handled per constant interleave-scatter matmul (tile-aligned when possible)."""
    for cand in (128, 64, 32, 16, 8):
        if L1 % cand == 0:
            return cand
    # TODO(synk): L1 not divisible by 8 falls back to one chunk per sample; fine for L1 <= 128.
    return L1


def _pick_batch_block(N, L2, target_rows=1024):
    """Samples per grid step: divisor of N, ~target_rows rows, >= 2 grid blocks when N > 1 (v7x)."""
    cap = max(1, target_rows // max(L2, 1))
    best = 1
    for d in range(1, N + 1):
        if N % d == 0 and d <= cap:
            best = d
    if N // best < 2:
        for d in range(best - 1, 0, -1):
            if N % d == 0 and N // d >= 2:
                best = d
                break
    return best


# ---------------------------------------------------------------------------
# Pass 1: ConvTranspose1d(k2,s2) + interleave + pad/crop + concat + Conv1d(k3,p1) + BN1 partial stats
# One grid step per batch block of B_blk samples.
# ---------------------------------------------------------------------------
def _up_concat_conv1_kernel(x1_ref, x2_ref, wt0_ref, wt1_ref, bt_ref, e0_ref, e1_ref,
                            w1s_ref, w1u_ref, z1_ref, ps1_ref, *, pad_left, pad_right, chunk):
    B, Cin, L1 = x1_ref.shape              # (B, Cin, L1)  NCL block
    _, Co, L2 = x2_ref.shape               # (B, Co, L2)
    Cp = wt0_ref.shape[1]
    f32, bf16 = jnp.float32, jnp.bfloat16

    # ConvTranspose1d: the two taps as two matmuls on the flattened (B*L1, Cin) rows.
    x1 = jnp.transpose(x1_ref[...], (0, 2, 1)).astype(bf16).reshape(B * L1, Cin)
    u0 = (jnp.dot(x1, wt0_ref[...], preferred_element_type=f32) + bt_ref[...]).astype(bf16)
    u1 = (jnp.dot(x1, wt1_ref[...], preferred_element_type=f32) + bt_ref[...]).astype(bf16)

    # Even/odd row interleave via constant (2c, c) 0/1 scatter matrices: tap0 -> even, tap1 -> odd.
    nch = (B * L1) // chunk
    if nch == 1:
        up = (jnp.dot(e0_ref[...], u0, preferred_element_type=f32)
              + jnp.dot(e1_ref[...], u1, preferred_element_type=f32))            # (2*chunk, Cp)
    else:
        u0c = u0.reshape(nch, chunk, Cp)
        u1c = u1.reshape(nch, chunk, Cp)
        up = (jnp.einsum('mj,bjc->bmc', e0_ref[...], u0c, preferred_element_type=f32)
              + jnp.einsum('mj,bjc->bmc', e1_ref[...], u1c, preferred_element_type=f32))
    up = up.reshape(B, 2 * L1, Cp)

    # F.pad(x1, [pad_left, pad_right]) with static Python sizes (negative pads crop).
    if pad_left > 0 or pad_right > 0:
        parts = []
        if pad_left > 0:
            parts.append(jnp.zeros((B, pad_left, Cp), f32))
        parts.append(up)
        if pad_right > 0:
            parts.append(jnp.zeros((B, pad_right, Cp), f32))
        up = jnp.concatenate(parts, axis=1)
    elif pad_left < 0 or pad_right < 0:
        up = up[:, -pad_left: 2 * L1 + pad_right, :]
    # up: (B, L2, Cp)

    # Conv1d(2Co -> Co, k=3, p=1, no bias).  The channel concat [x2, up] is folded by splitting the
    # weight; the 3 taps are stacked along the output column dim of a single matmul each.
    x2 = jnp.transpose(x2_ref[...], (0, 2, 1)).astype(bf16).reshape(B * L2, Co)
    upf = up.astype(bf16).reshape(B * L2, Cp)
    y = (jnp.dot(x2, w1s_ref[...], preferred_element_type=f32)
         + jnp.dot(upf, w1u_ref[...], preferred_element_type=f32)).reshape(B, L2, 3 * Cp)

    p0, p1, p2 = y[:, :, :Cp], y[:, :, Cp:2 * Cp], y[:, :, 2 * Cp:]
    zr = jnp.zeros((B, 1, Cp), f32)
    z = (jnp.concatenate([zr, p0[:, :-1, :]], axis=1)        # tap k=0 reads x[l-1]
         + p1                                                # tap k=1 reads x[l]
         + jnp.concatenate([p2[:, 1:, :], zr], axis=1))      # tap k=2 reads x[l+1]

    zq = z.astype(z1_ref.dtype)
    z1_ref[...] = zq
    zf = zq.astype(f32)   # stats on the rounded values actually normalized in pass 2
    ps1_ref[...] = jnp.concatenate(
        [jnp.sum(zf, axis=(0, 1), keepdims=True),
         jnp.sum(zf * zf, axis=(0, 1), keepdims=True)], axis=1)


# ---------------------------------------------------------------------------
# Pass 2: BN1 (folded scale/shift) + ReLU + Conv1d(k3,p1) + BN2 partial stats
# ---------------------------------------------------------------------------
def _bnrelu_conv2_kernel(z1_ref, sc_ref, sh_ref, w2_ref, z2_ref, ps2_ref):
    B, L2, Cp = z1_ref.shape
    f32, bf16 = jnp.float32, jnp.bfloat16
    a = jnp.maximum(z1_ref[...].astype(f32) * sc_ref[...] + sh_ref[...], 0.0)    # (B, L2, Cp)
    y = jnp.dot(a.astype(bf16).reshape(B * L2, Cp), w2_ref[...],
                preferred_element_type=f32).reshape(B, L2, 3 * Cp)
    p0, p1, p2 = y[:, :, :Cp], y[:, :, Cp:2 * Cp], y[:, :, 2 * Cp:]
    zr = jnp.zeros((B, 1, Cp), f32)
    z = (jnp.concatenate([zr, p0[:, :-1, :]], axis=1) + p1
         + jnp.concatenate([p2[:, 1:, :], zr], axis=1))

    zq = z.astype(z2_ref.dtype)
    z2_ref[...] = zq
    zf = zq.astype(f32)
    ps2_ref[...] = jnp.concatenate(
        [jnp.sum(zf, axis=(0, 1), keepdims=True),
         jnp.sum(zf * zf, axis=(0, 1), keepdims=True)], axis=1)


# ---------------------------------------------------------------------------
# Pass 3: BN2 (folded scale/shift) + ReLU, written back directly in NCL layout.
# ---------------------------------------------------------------------------
def _bnrelu_out_kernel(z2_ref, sc_ref, sh_ref, o_ref, *, Co):
    B, L2, Cp = z2_ref.shape
    a = jnp.maximum(z2_ref[...].astype(jnp.float32) * sc_ref[...] + sh_ref[...], 0.0)
    if Cp != Co:
        a = a[:, :, :Co]
    o_ref[...] = jnp.transpose(a, (0, 2, 1)).astype(o_ref.dtype)                 # (B, Co, L2)


# ---------------------------------------------------------------------------
# Wrapper: only tiny parameter reshuffles and (2, Cp)-sized stat finalization outside the kernels.
# ---------------------------------------------------------------------------
def up_forward(x1_ncl, x2_ncl, p):
    N, Cin, L1 = x1_ncl.shape
    N2, Co, L2 = x2_ncl.shape
    assert N2 == N
    diff = L2 - 2 * L1
    pad_left = diff // 2                      # python floor div; negative diff => crop (like F.pad)
    pad_right = diff - pad_left

    f32, bf16 = jnp.float32, jnp.bfloat16
    out_dtype = x2_ncl.dtype

    # Lane-align the channel dim only when the padding overhead is modest (<= ~33%).
    Cp = _round_up(Co, 128) if _round_up(Co, 128) * 3 <= 4 * Co else Co

    chunk = _pick_chunk(L1)
    B_blk = _pick_batch_block(N, L2)
    G = N // B_blk

    # --- parameter prep (tiny, one-off) ---
    def pad_cols(a):
        return a if a.shape[1] == Cp else jnp.pad(a, ((0, 0), (0, Cp - a.shape[1])))

    def pad_rows(a):
        return a if a.shape[0] == Cp else jnp.pad(a, ((0, Cp - a.shape[0]), (0, 0)))

    def pad_vec(v):
        return v if v.shape[0] == Cp else jnp.pad(v, (0, Cp - v.shape[0]))

    wt0 = pad_cols(p["wt"][:, :, 0]).astype(bf16)                       # (Cin, Cp) tap 0
    wt1 = pad_cols(p["wt"][:, :, 1]).astype(bf16)                       # (Cin, Cp) tap 1
    bt = pad_cols(p["bt"].astype(f32)[None, :])                         # (1, Cp)
    w1s = jnp.concatenate([pad_cols(p["w1"][:, :Co, k].T) for k in range(3)],
                          axis=1).astype(bf16)                          # (Co, 3Cp) skip half
    w1u = pad_rows(jnp.concatenate([pad_cols(p["w1"][:, Co:, k].T) for k in range(3)],
                                   axis=1)).astype(bf16)                # (Cp, 3Cp) upsample half
    w2 = pad_rows(jnp.concatenate([pad_cols(p["w2"][:, :, k].T) for k in range(3)],
                                  axis=1)).astype(bf16)                 # (Cp, 3Cp)
    g1 = pad_vec(p["g1"].astype(f32)); b1 = pad_vec(p["b1"].astype(f32))
    g2 = pad_vec(p["g2"].astype(f32)); b2 = pad_vec(p["b2"].astype(f32))

    # Constant 0/1 interleave scatter matrices (2*chunk, chunk) — O(chunk^2), built once.
    mi = np.arange(2 * chunk)[:, None]
    ji = np.arange(chunk)[None, :]
    e0 = jnp.asarray((mi == 2 * ji).astype(np.float32)).astype(bf16)
    e1 = jnp.asarray((mi == 2 * ji + 1).astype(np.float32)).astype(bf16)

    # Generation-aware VMEM budget (~48 MiB on v7x, ~96 MiB on v5e/v6e).
    try:
        vmem_cap = int(pltpu.get_tpu_info().vmem_capacity_bytes)
    except Exception:
        vmem_cap = 64 * 1024 * 1024
    vmem_limit = max(32 * 1024 * 1024, min(vmem_cap * 3 // 4, 100 * 1024 * 1024))
    cp = pltpu.CompilerParams(dimension_semantics=("parallel",), vmem_limit_bytes=vmem_limit)

    itm = x1_ncl.dtype.itemsize
    flops1 = (2 * N * L1 * Cin * 2 * Cp + 2 * N * 2 * L1 * chunk * Cp
              + 2 * N * L2 * (Co + Cp) * 3 * Cp)
    bytes1 = itm * (x1_ncl.size + x2_ncl.size) + 2 * N * L2 * Cp + 4 * G * 2 * Cp
    cost1 = pl.CostEstimate(flops=int(flops1), transcendentals=0, bytes_accessed=int(bytes1))

    # --- pass 1: upsample + pad + concat + conv1, plus per-block BN1 partial stats ---
    z1, ps1 = pl.pallas_call(
        partial(_up_concat_conv1_kernel, pad_left=pad_left, pad_right=pad_right, chunk=chunk),
        out_shape=(jax.ShapeDtypeStruct((N, L2, Cp), bf16),
                   jax.ShapeDtypeStruct((G, 2, Cp), f32)),
        grid=(G,),
        in_specs=[pl.BlockSpec((B_blk, Cin, L1), lambda n: (n, 0, 0)),
                  pl.BlockSpec((B_blk, Co, L2), lambda n: (n, 0, 0)),
                  pl.BlockSpec((Cin, Cp), lambda n: (0, 0)),
                  pl.BlockSpec((Cin, Cp), lambda n: (0, 0)),
                  pl.BlockSpec((1, Cp), lambda n: (0, 0)),
                  pl.BlockSpec((2 * chunk, chunk), lambda n: (0, 0)),
                  pl.BlockSpec((2 * chunk, chunk), lambda n: (0, 0)),
                  pl.BlockSpec((Co, 3 * Cp), lambda n: (0, 0)),
                  pl.BlockSpec((Cp, 3 * Cp), lambda n: (0, 0))],
        out_specs=(pl.BlockSpec((B_blk, L2, Cp), lambda n: (n, 0, 0)),
                   pl.BlockSpec((1, 2, Cp), lambda n: (n, 0, 0))),
        compiler_params=cp,
        cost_estimate=cost1,
    )(x1_ncl, x2_ncl, wt0, wt1, bt, e0, e1, w1s, w1u)

    # --- finalize BN1 stats (tiny) and fold gamma/beta into (scale, shift) ---
    cnt = jnp.float32(N * L2)
    s1 = jnp.sum(ps1, axis=0)                          # (2, Cp)
    mu1 = s1[0] / cnt
    var1 = jnp.maximum(s1[1] / cnt - mu1 * mu1, 0.0)   # biased variance (train-mode BN)
    inv1 = jax.lax.rsqrt(var1 + _EPS)
    scale1 = (g1 * inv1)[None, :]                      # (1, Cp)
    shift1 = (b1 - mu1 * g1 * inv1)[None, :]

    flops2 = 2 * N * L2 * Cp * 3 * Cp + 8 * N * L2 * Cp
    bytes2 = 2 * N * L2 * Cp * 2 + 4 * G * 2 * Cp
    cost2 = pl.CostEstimate(flops=int(flops2), transcendentals=0, bytes_accessed=int(bytes2))

    # --- pass 2: BN1+ReLU + conv2, plus per-block BN2 partial stats ---
    z2, ps2 = pl.pallas_call(
        _bnrelu_conv2_kernel,
        out_shape=(jax.ShapeDtypeStruct((N, L2, Cp), bf16),
                   jax.ShapeDtypeStruct((G, 2, Cp), f32)),
        grid=(G,),
        in_specs=[pl.BlockSpec((B_blk, L2, Cp), lambda n: (n, 0, 0)),
                  pl.BlockSpec((1, Cp), lambda n: (0, 0)),
                  pl.BlockSpec((1, Cp), lambda n: (0, 0)),
                  pl.BlockSpec((Cp, 3 * Cp), lambda n: (0, 0))],
        out_specs=(pl.BlockSpec((B_blk, L2, Cp), lambda n: (n, 0, 0)),
                   pl.BlockSpec((1, 2, Cp), lambda n: (n, 0, 0))),
        compiler_params=cp,
        cost_estimate=cost2,
    )(z1, scale1, shift1, w2)

    s2 = jnp.sum(ps2, axis=0)
    mu2 = s2[0] / cnt
    var2 = jnp.maximum(s2[1] / cnt - mu2 * mu2, 0.0)
    inv2 = jax.lax.rsqrt(var2 + _EPS)
    scale2 = (g2 * inv2)[None, :]
    shift2 = (b2 - mu2 * g2 * inv2)[None, :]

    flops3 = 4 * N * L2 * Cp
    bytes3 = 2 * N * L2 * Cp + out_dtype.itemsize * N * Co * L2
    cost3 = pl.CostEstimate(flops=int(flops3), transcendentals=0, bytes_accessed=int(bytes3))

    # --- pass 3: BN2+ReLU, written back directly in NCL layout ---
    out = pl.pallas_call(
        partial(_bnrelu_out_kernel, Co=Co),
        out_shape=jax.ShapeDtypeStruct((N, Co, L2), out_dtype),
        grid=(G,),
        in_specs=[pl.BlockSpec((B_blk, L2, Cp), lambda n: (n, 0, 0)),
                  pl.BlockSpec((1, Cp), lambda n: (0, 0)),
                  pl.BlockSpec((1, Cp), lambda n: (0, 0))],
        out_specs=pl.BlockSpec((B_blk, Co, L2), lambda n: (n, 0, 0)),
        compiler_params=cp,
        cost_estimate=cost3,
    )(z2, scale2, shift2)

    return out


# ---------------------------------------------------------------------------
# Pure-JAX f32 reference (NCL layout) for verification
# ---------------------------------------------------------------------------
def ref_forward(x1_ncl, x2_ncl, p):
    N, Cin, L1 = x1_ncl.shape
    _, Co, L2 = x2_ncl.shape
    u = jnp.einsum("ncl,cok->nolk", x1_ncl, p["wt"])            # (N, Co, L1, 2)
    up = u.reshape(N, Co, 2 * L1) + p["bt"][None, :, None]
    diff = L2 - 2 * L1                                          # test uses diff >= 0
    up = jnp.pad(up, ((0, 0), (0, 0), (diff // 2, diff - diff // 2)))
    x = jnp.concatenate([x2_ncl, up], axis=1)

    def conv_bn_relu(x, w, g, b):
        L = x.shape[2]
        xp = jnp.pad(x, ((0, 0), (0, 0), (1, 1)))
        y = sum(jnp.einsum("ncl,oc->nol", xp[:, :, k:k + L], w[:, :, k]) for k in range(3))
        mu = y.mean(axis=(0, 2), keepdims=True)
        var = ((y - mu) ** 2).mean(axis=(0, 2), keepdims=True)
        yh = (y - mu) / jnp.sqrt(var + _EPS) * g[None, :, None] + b[None, :, None]
        return jnp.maximum(yh, 0.0)

    y = conv_bn_relu(x, p["w1"], p["g1"], p["b1"])
    y = conv_bn_relu(y, p["w2"], p["g2"], p["b2"])
    return y


def init_params(key, in_ch, out_ch):
    ks = jax.random.split(key, 8)
    s = 0.2
    return dict(
        wt=s * jax.random.normal(ks[0], (in_ch, out_ch, 2), jnp.float32),       # ConvTranspose1d weight
        bt=s * jax.random.normal(ks[1], (out_ch,), jnp.float32),                # ConvTranspose1d bias
        w1=s * jax.random.normal(ks[2], (out_ch, 2 * out_ch, 3), jnp.float32),  # Conv1d #1 (no bias)
        g1=1.0 + 0.1 * jax.random.normal(ks[3], (out_ch,), jnp.float32),        # BN1 gamma
        b1=0.1 * jax.random.normal(ks[4], (out_ch,), jnp.float32),              # BN1 beta
        w2=s * jax.random.normal(ks[5], (out_ch, out_ch, 3), jnp.float32),      # Conv1d #2 (no bias)
        g2=1.0 + 0.1 * jax.random.normal(ks[6], (out_ch,), jnp.float32),        # BN2 gamma
        b2=0.1 * jax.random.normal(ks[7], (out_ch,), jnp.float32),              # BN2 beta
    )


if __name__ == "__main__":
    N, Cin, Co, L1, L2 = 2, 8, 4, 8, 16          # Up(in_channels=8, out_channels=4)
    key = jax.random.PRNGKey(0)
    k1, k2 = jax.random.split(key)
    x1 = jax.random.normal(k1, (N, Cin, L1), jnp.float32)   # low-res feature (NCL)
    x2 = jax.random.normal(k2, (N, Co, L2), jnp.float32)    # skip connection (NCL)
    params = init_params(jax.random.PRNGKey(42), Cin, Co)

    out = jax.jit(up_forward)(x1, x2, params)
    out = jax.block_until_ready(out)

    ref = ref_forward(x1, x2, params)
    assert out.shape == (N, Co, L2), out.shape
    max_err = float(jnp.max(jnp.abs(out - ref)))
    # bf16 matmul operands / bf16 HBM intermediates with f32 accumulation -> tolerance sized accordingly.
    if max_err > 5e-2:
        raise AssertionError(f"mismatch vs reference: max abs err = {max_err}")
    print("KERNEL_OK")
</pallas_src>

<mosaic_0001>
module attributes {stable_mosaic.version = 11 : i64} {
  func.func @_up_concat_conv1_kernel(%arg0: i32, %arg1: memref<1x8x8xf32, #tpu.memory_space<vmem>>, %arg2: memref<1x4x16xf32, #tpu.memory_space<vmem>>, %arg3: memref<8x4xbf16, #tpu.memory_space<vmem>>, %arg4: memref<8x4xbf16, #tpu.memory_space<vmem>>, %arg5: memref<1x4xf32, #tpu.memory_space<vmem>>, %arg6: memref<16x8xbf16, #tpu.memory_space<vmem>>, %arg7: memref<16x8xbf16, #tpu.memory_space<vmem>>, %arg8: memref<4x12xbf16, #tpu.memory_space<vmem>>, %arg9: memref<4x12xbf16, #tpu.memory_space<vmem>>, %arg10: memref<1x16x4xbf16, #tpu.memory_space<vmem>>, %arg11: memref<1x2x4xf32, #tpu.memory_space<vmem>>) attributes {dimension_semantics = [#tpu.dimension_semantics<parallel>], iteration_bounds = array<i64: 2>, scalar_prefetch = 0 : i64, scratch_operands = 0 : i64, tpu.core_type = #tpu.core_type<tc>, window_params = [{transform_indices = @transform_0, window_bounds = array<i64: 1, 8, 8>}, {transform_indices = @transform_1, window_bounds = array<i64: 1, 4, 16>}, {pipeline_mode = #tpu.pipeline_mode<synchronous>, transform_indices = @transform_2, window_bounds = array<i64: 8, 4>}, {pipeline_mode = #tpu.pipeline_mode<synchronous>, transform_indices = @transform_3, window_bounds = array<i64: 8, 4>}, {pipeline_mode = #tpu.pipeline_mode<synchronous>, transform_indices = @transform_4, window_bounds = array<i64: 1, 4>}, {pipeline_mode = #tpu.pipeline_mode<synchronous>, transform_indices = @transform_5, window_bounds = array<i64: 16, 8>}, {pipeline_mode = #tpu.pipeline_mode<synchronous>, transform_indices = @transform_6, window_bounds = array<i64: 16, 8>}, {pipeline_mode = #tpu.pipeline_mode<synchronous>, transform_indices = @transform_7, window_bounds = array<i64: 4, 12>}, {pipeline_mode = #tpu.pipeline_mode<synchronous>, transform_indices = @transform_8, window_bounds = array<i64: 4, 12>}, {transform_indices = @transform_9, window_bounds = array<i64: 1, 16, 4>}, {transform_indices = @transform_10, window_bounds = array<i64: 1, 2, 4>}]} {
    %c0 = arith.constant 0 : index
    %c0_0 = arith.constant 0 : index
    %c0_1 = arith.constant 0 : index
    %0 = vector.load %arg1[%c0, %c0_0, %c0_1] : memref<1x8x8xf32, #tpu.memory_space<vmem>>, vector<1x8x8xf32>
    %1 = tpu.transpose %0, [0, 2, 1] : vector<1x8x8xf32> -> vector<1x8x8xf32>
    %2 = arith.truncf %1 : vector<1x8x8xf32> to vector<1x8x8xbf16>
    %3 = vector.shape_cast %2 : vector<1x8x8xbf16> to vector<8x8xbf16>
    %c0_2 = arith.constant 0 : index
    %c0_3 = arith.constant 0 : index
    %4 = vector.load %arg3[%c0_2, %c0_3] : memref<8x4xbf16, #tpu.memory_space<vmem>>, vector<8x4xbf16>
    %cst = arith.constant dense<0.000000e+00> : vector<8x4xf32>
    %5 = tpu.matmul %3, %4, %cst {dimension_numbers = #tpu.dot_dimension_numbers<[1], [0], [0], [1], [0, 0, 1, 1], [], []>} : vector<8x8xbf16>, vector<8x4xbf16>, vector<8x4xf32> -> vector<8x4xf32>
    %c0_4 = arith.constant 0 : index
    %c0_5 = arith.constant 0 : index
    %6 = vector.load %arg5[%c0_4, %c0_5] : memref<1x4xf32, #tpu.memory_space<vmem>>, vector<1x4xf32>
    %7 = vector.broadcast %6 : vector<1x4xf32> to vector<8x4xf32>
    %8 = arith.addf %5, %7 : vector<8x4xf32>
    %9 = arith.truncf %8 : vector<8x4xf32> to vector<8x4xbf16>
    %c0_6 = arith.constant 0 : index
    %c0_7 = arith.constant 0 : index
    %10 = vector.load %arg4[%c0_6, %c0_7] : memref<8x4xbf16, #tpu.memory_space<vmem>>, vector<8x4xbf16>
    %cst_8 = arith.constant dense<0.000000e+00> : vector<8x4xf32>
    %11 = tpu.matmul %3, %10, %cst_8 {dimension_numbers = #tpu.dot_dimension_numbers<[1], [0], [0], [1], [0, 0, 1, 1], [], []>} : vector<8x8xbf16>, vector<8x4xbf16>, vector<8x4xf32> -> vector<8x4xf32>
    %c0_9 = arith.constant 0 : index
    %c0_10 = arith.constant 0 : index
    %12 = vector.load %arg5[%c0_9, %c0_10] : memref<1x4xf32, #tpu.memory_space<vmem>>, vector<1x4xf32>
    %13 = vector.broadcast %12 : vector<1x4xf32> to vector<8x4xf32>
    %14 = arith.addf %11, %13 : vector<8x4xf32>
    %15 = arith.truncf %14 : vector<8x4xf32> to vector<8x4xbf16>
    %c0_11 = arith.constant 0 : index
    %c0_12 = arith.constant 0 : index
    %16 = vector.load %arg6[%c0_11, %c0_12] : memref<16x8xbf16, #tpu.memory_space<vmem>>, vector<16x8xbf16>
    %cst_13 = arith.constant dense<0.000000e+00> : vector<16x4xf32>
    %17 = tpu.matmul %16, %9, %cst_13 {dimension_numbers = #tpu.dot_dimension_numbers<[1], [0], [0], [1], [0, 0, 1, 1], [], []>} : vector<16x8xbf16>, vector<8x4xbf16>, vector<16x4xf32> -> vector<16x4xf32>
    %c0_14 = arith.constant 0 : index
    %c0_15 = arith.constant 0 : index
    %18 = vector.load %arg7[%c0_14, %c0_15] : memref<16x8xbf16, #tpu.memory_space<vmem>>, vector<16x8xbf16>
    %cst_16 = arith.constant dense<0.000000e+00> : vector<16x4xf32>
    %19 = tpu.matmul %18, %15, %cst_16 {dimension_numbers = #tpu.dot_dimension_numbers<[1], [0], [0], [1], [0, 0, 1, 1], [], []>} : vector<16x8xbf16>, vector<8x4xbf16>, vector<16x4xf32> -> vector<16x4xf32>
    %20 = arith.addf %17, %19 : vector<16x4xf32>
    %21 = vector.shape_cast %20 : vector<16x4xf32> to vector<1x16x4xf32>
    %c0_17 = arith.constant 0 : index
    %c0_18 = arith.constant 0 : index
    %c0_19 = arith.constant 0 : index
    %22 = vector.load %arg2[%c0_17, %c0_18, %c0_19] : memref<1x4x16xf32, #tpu.memory_space<vmem>>, vector<1x4x16xf32>
    %23 = tpu.transpose %22, [0, 2, 1] : vector<1x4x16xf32> -> vector<1x16x4xf32>
    %24 = arith.truncf %23 : vector<1x16x4xf32> to vector<1x16x4xbf16>
    %25 = vector.shape_cast %24 : vector<1x16x4xbf16> to vector<16x4xbf16>
    %26 = arith.truncf %21 : vector<1x16x4xf32> to vector<1x16x4xbf16>
    %27 = vector.shape_cast %26 : vector<1x16x4xbf16> to vector<16x4xbf16>
    %c0_20 = arith.constant 0 : index
    %c0_21 = arith.constant 0 : index
    %28 = vector.load %arg8[%c0_20, %c0_21] : memref<4x12xbf16, #tpu.memory_space<vmem>>, vector<4x12xbf16>
    %cst_22 = arith.constant dense<0.000000e+00> : vector<16x12xf32>
    %29 = tpu.matmul %25, %28, %cst_22 {dimension_numbers = #tpu.dot_dimension_numbers<[1], [0], [0], [1], [0, 0, 1, 1], [], []>} : vector<16x4xbf16>, vector<4x12xbf16>, vector<16x12xf32> -> vector<16x12xf32>
    %c0_23 = arith.constant 0 : index
    %c0_24 = arith.constant 0 : index
    %30 = vector.load %arg9[%c0_23, %c0_24] : memref<4x12xbf16, #tpu.memory_space<vmem>>, vector<4x12xbf16>
    %cst_25 = arith.constant dense<0.000000e+00> : vector<16x12xf32>
    %31 = tpu.matmul %27, %30, %cst_25 {dimension_numbers = #tpu.dot_dimension_numbers<[1], [0], [0], [1], [0, 0, 1, 1], [], []>} : vector<16x4xbf16>, vector<4x12xbf16>, vector<16x12xf32> -> vector<16x12xf32>
    %32 = arith.addf %29, %31 : vector<16x12xf32>
    %33 = vector.shape_cast %32 : vector<16x12xf32> to vector<1x16x12xf32>
    %34 = vector.extract_strided_slice %33 {offsets = [0, 0, 0], sizes = [1, 16, 4], strides = [1, 1, 1]} : vector<1x16x12xf32> to vector<1x16x4xf32>
    %35 = vector.extract_strided_slice %33 {offsets = [0, 0, 4], sizes = [1, 16, 4], strides = [1, 1, 1]} : vector<1x16x12xf32> to vector<1x16x4xf32>
    %36 = vector.extract_strided_slice %33 {offsets = [0, 0, 8], sizes = [1, 16, 4], strides = [1, 1, 1]} : vector<1x16x12xf32> to vector<1x16x4xf32>
    %cst_26 = arith.constant 0.000000e+00 : f32
    %37 = vector.broadcast %cst_26 : f32 to vector<1x1x4xf32>
    %38 = vector.extract_strided_slice %34 {offsets = [0, 0, 0], sizes = [1, 15, 4], strides = [1, 1, 1]} : vector<1x16x4xf32> to vector<1x15x4xf32>
    %39 = tpu.concatenate %37, %38 in 1 : vector<1x1x4xf32>, vector<1x15x4xf32> -> vector<1x16x4xf32>
    %40 = arith.addf %39, %35 : vector<1x16x4xf32>
    %41 = vector.extract_strided_slice %36 {offsets = [0, 1, 0], sizes = [1, 15, 4], strides = [1, 1, 1]} : vector<1x16x4xf32> to vector<1x15x4xf32>
    %42 = tpu.concatenate %41, %37 in 1 : vector<1x15x4xf32>, vector<1x1x4xf32> -> vector<1x16x4xf32>
    %43 = arith.addf %40, %42 : vector<1x16x4xf32>
    %44 = arith.truncf %43 : vector<1x16x4xf32> to vector<1x16x4xbf16>
    %c0_27 = arith.constant 0 : index
    %c0_28 = arith.constant 0 : index
    %c0_29 = arith.constant 0 : index
    %45 = vector.load %arg10[%c0_27, %c0_28, %c0_29] : memref<1x16x4xbf16, #tpu.memory_space<vmem>>, vector<1x16x4xbf16>
    tpu.vector_store %arg10[%c0_27, %c0_28, %c0_29], %44 {strides = array<i32>} : memref<1x16x4xbf16, #tpu.memory_space<vmem>>, vector<1x16x4xbf16>,
    %46 = arith.extf %44 : vector<1x16x4xbf16> to vector<1x16x4xf32>
    %cst_30 = arith.constant dense<0.000000e+00> : vector<4xf32>
    %47 = vector.multi_reduction <add>, %46, %cst_30 [0, 1] : vector<1x16x4xf32> to vector<4xf32>
    %48 = vector.shape_cast %47 : vector<4xf32> to vector<1x1x4xf32>
    %49 = arith.mulf %46, %46 : vector<1x16x4xf32>
    %cst_31 = arith.constant dense<0.000000e+00> : vector<4xf32>
    %50 = vector.multi_reduction <add>, %49, %cst_31 [0, 1] : vector<1x16x4xf32> to vector<4xf32>
    %51 = vector.shape_cast %50 : vector<4xf32> to vector<1x1x4xf32>
    %52 = tpu.concatenate %48, %51 in 1 : vector<1x1x4xf32>, vector<1x1x4xf32> -> vector<1x2x4xf32>
    %c0_32 = arith.constant 0 : index
    %c0_33 = arith.constant 0 : index
    %c0_34 = arith.constant 0 : index
    %53 = vector.load %arg11[%c0_32, %c0_33, %c0_34] : memref<1x2x4xf32, #tpu.memory_space<vmem>>, vector<1x2x4xf32>
    tpu.vector_store %arg11[%c0_32, %c0_33, %c0_34], %52 {strides = array<i32>} : memref<1x2x4xf32, #tpu.memory_space<vmem>>, vector<1x2x4xf32>,
    return
  }
  func.func @transform_0(%arg0: i32) -> (i32, i32, i32) {
    %c0_i32 = arith.constant 0 : i32
    %c0_i32_0 = arith.constant 0 : i32
    %c0_i32_1 = arith.constant 0 : i32
    return %arg0, %c0_i32, %c0_i32_0 : i32, i32, i32
  }
  func.func @transform_1(%arg0: i32) -> (i32, i32, i32) {
    %c0_i32 = arith.constant 0 : i32
    %c0_i32_0 = arith.constant 0 : i32
    %c0_i32_1 = arith.constant 0 : i32
    return %arg0, %c0_i32, %c0_i32_0 : i32, i32, i32
  }
  func.func @transform_2(%arg0: i32) -> (i32, i32) {
    %c0_i32 = arith.constant 0 : i32
    %c0_i32_0 = arith.constant 0 : i32
    %c0_i32_1 = arith.constant 0 : i32
    return %c0_i32, %c0_i32_0 : i32, i32
  }
  func.func @transform_3(%arg0: i32) -> (i32, i32) {
    %c0_i32 = arith.constant 0 : i32
    %c0_i32_0 = arith.constant 0 : i32
    %c0_i32_1 = arith.constant 0 : i32
    return %c0_i32, %c0_i32_0 : i32, i32
  }
  func.func @transform_4(%arg0: i32) -> (i32, i32) {
    %c0_i32 = arith.constant 0 : i32
    %c0_i32_0 = arith.constant 0 : i32
    %c0_i32_1 = arith.constant 0 : i32
    return %c0_i32, %c0_i32_0 : i32, i32
  }
  func.func @transform_5(%arg0: i32) -> (i32, i32) {
    %c0_i32 = arith.constant 0 : i32
    %c0_i32_0 = arith.constant 0 : i32
    %c0_i32_1 = arith.constant 0 : i32
    return %c0_i32, %c0_i32_0 : i32, i32
  }
  func.func @transform_6(%arg0: i32) -> (i32, i32) {
    %c0_i32 = arith.constant 0 : i32
    %c0_i32_0 = arith.constant 0 : i32
    %c0_i32_1 = arith.constant 0 : i32
    return %c0_i32, %c0_i32_0 : i32, i32
  }
  func.func @transform_7(%arg0: i32) -> (i32, i32) {
    %c0_i32 = arith.constant 0 : i32
    %c0_i32_0 = arith.constant 0 : i32
    %c0_i32_1 = arith.constant 0 : i32
    return %c0_i32, %c0_i32_0 : i32, i32
  }
  func.func @transform_8(%arg0: i32) -> (i32, i32) {
    %c0_i32 = arith.constant 0 : i32
    %c0_i32_0 = arith.constant 0 : i32
    %c0_i32_1 = arith.constant 0 : i32
    return %c0_i32, %c0_i32_0 : i32, i32
  }
  func.func @transform_9(%arg0: i32) -> (i32, i32, i32) {
    %c0_i32 = arith.constant 0 : i32
    %c0_i32_0 = arith.constant 0 : i32
    %c0_i32_1 = arith.constant 0 : i32
    return %arg0, %c0_i32, %c0_i32_0 : i32, i32, i32
  }
  func.func @transform_10(%arg0: i32) -> (i32, i32, i32) {
    %c0_i32 = arith.constant 0 : i32
    %c0_i32_0 = arith.constant 0 : i32
    %c0_i32_1 = arith.constant 0 : i32
    return %arg0, %c0_i32, %c0_i32_0 : i32, i32, i32
  }
}

module attributes {stable_mosaic.version = 11 : i64} {
  func.func @_bnrelu_out_kernel(%arg0: i32, %arg1: memref<1x16x4xbf16, #tpu.memory_space<vmem>>, %arg2: memref<1x4xf32, #tpu.memory_space<vmem>>, %arg3: memref<1x4xf32, #tpu.memory_space<vmem>>, %arg4: memref<1x4x16xf32, #tpu.memory_space<vmem>>) attributes {dimension_semantics = [#tpu.dimension_semantics<parallel>], iteration_bounds = array<i64: 2>, scalar_prefetch = 0 : i64, scratch_operands = 0 : i64, tpu.core_type = #tpu.core_type<tc>, window_params = [{transform_indices = @transform_0, window_bounds = array<i64: 1, 16, 4>}, {pipeline_mode = #tpu.pipeline_mode<synchronous>, transform_indices = @transform_1, window_bounds = array<i64: 1, 4>}, {pipeline_mode = #tpu.pipeline_mode<synchronous>, transform_indices = @transform_2, window_bounds = array<i64: 1, 4>}, {transform_indices = @transform_3, window_bounds = array<i64: 1, 4, 16>}]} {
    %c0 = arith.constant 0 : index
    %c0_0 = arith.constant 0 : index
    %c0_1 = arith.constant 0 : index
    %0 = vector.load %arg1[%c0, %c0_0, %c0_1] : memref<1x16x4xbf16, #tpu.memory_space<vmem>>, vector<1x16x4xbf16>
    %1 = arith.extf %0 : vector<1x16x4xbf16> to vector<1x16x4xf32>
    %c0_2 = arith.constant 0 : index
    %c0_3 = arith.constant 0 : index
    %2 = vector.load %arg2[%c0_2, %c0_3] : memref<1x4xf32, #tpu.memory_space<vmem>>, vector<1x4xf32>
    %3 = vector.shape_cast %2 : vector<1x4xf32> to vector<1x1x4xf32>
    %4 = vector.broadcast %3 : vector<1x1x4xf32> to vector<1x16x4xf32>
    %5 = arith.mulf %1, %4 : vector<1x16x4xf32>
    %c0_4 = arith.constant 0 : index
    %c0_5 = arith.constant 0 : index
    %6 = vector.load %arg3[%c0_4, %c0_5] : memref<1x4xf32, #tpu.memory_space<vmem>>, vector<1x4xf32>
    %7 = vector.shape_cast %6 : vector<1x4xf32> to vector<1x1x4xf32>
    %8 = vector.broadcast %7 : vector<1x1x4xf32> to vector<1x16x4xf32>
    %9 = arith.addf %5, %8 : vector<1x16x4xf32>
    %cst = arith.constant 0.000000e+00 : f32
    %10 = vector.broadcast %cst : f32 to vector<1x16x4xf32>
    %11 = arith.maximumf %9, %10 : vector<1x16x4xf32>
    %12 = tpu.transpose %11, [0, 2, 1] : vector<1x16x4xf32> -> vector<1x4x16xf32>
    %c0_6 = arith.constant 0 : index
    %c0_7 = arith.constant 0 : index
    %c0_8 = arith.constant 0 : index
    %13 = vector.load %arg4[%c0_6, %c0_7, %c0_8] : memref<1x4x16xf32, #tpu.memory_space<vmem>>, vector<1x4x16xf32>
    tpu.vector_store %arg4[%c0_6, %c0_7, %c0_8], %12 {strides = array<i32>} : memref<1x4x16xf32, #tpu.memory_space<vmem>>, vector<1x4x16xf32>,
    return
  }
  func.func @transform_0(%arg0: i32) -> (i32, i32, i32) {
    %c0_i32 = arith.constant 0 : i32
    %c0_i32_0 = arith.constant 0 : i32
    %c0_i32_1 = arith.constant 0 : i32
    return %arg0, %c0_i32, %c0_i32_0 : i32, i32, i32
  }
  func.func @transform_1(%arg0: i32) -> (i32, i32) {
    %c0_i32 = arith.constant 0 : i32
    %c0_i32_0 = arith.constant 0 : i32
    %c0_i32_1 = arith.constant 0 : i32
    return %c0_i32, %c0_i32_0 : i32, i32
  }
  func.func @transform_2(%arg0: i32) -> (i32, i32) {
    %c0_i32 = arith.constant 0 : i32
    %c0_i32_0 = arith.constant 0 : i32
    %c0_i32_1 = arith.constant 0 : i32
    return %c0_i32, %c0_i32_0 : i32, i32
  }
  func.func @transform_3(%arg0: i32) -> (i32, i32, i32) {
    %c0_i32 = arith.constant 0 : i32
    %c0_i32_0 = arith.constant 0 : i32
    %c0_i32_1 = arith.constant 0 : i32
    return %arg0, %c0_i32, %c0_i32_0 : i32, i32, i32
  }
}

module attributes {stable_mosaic.version = 11 : i64} {
  func.func @_bnrelu_conv2_kernel(%arg0: i32, %arg1: memref<1x16x4xbf16, #tpu.memory_space<vmem>>, %arg2: memref<1x4xf32, #tpu.memory_space<vmem>>, %arg3: memref<1x4xf32, #tpu.memory_space<vmem>>, %arg4: memref<4x12xbf16, #tpu.memory_space<vmem>>, %arg5: memref<1x16x4xbf16, #tpu.memory_space<vmem>>, %arg6: memref<1x2x4xf32, #tpu.memory_space<vmem>>) attributes {dimension_semantics = [#tpu.dimension_semantics<parallel>], iteration_bounds = array<i64: 2>, scalar_prefetch = 0 : i64, scratch_operands = 0 : i64, tpu.core_type = #tpu.core_type<tc>, window_params = [{transform_indices = @transform_0, window_bounds = array<i64: 1, 16, 4>}, {pipeline_mode = #tpu.pipeline_mode<synchronous>, transform_indices = @transform_1, window_bounds = array<i64: 1, 4>}, {pipeline_mode = #tpu.pipeline_mode<synchronous>, transform_indices = @transform_2, window_bounds = array<i64: 1, 4>}, {pipeline_mode = #tpu.pipeline_mode<synchronous>, transform_indices = @transform_3, window_bounds = array<i64: 4, 12>}, {transform_indices = @transform_4, window_bounds = array<i64: 1, 16, 4>}, {transform_indices = @transform_5, window_bounds = array<i64: 1, 2, 4>}]} {
    %c0 = arith.constant 0 : index
    %c0_0 = arith.constant 0 : index
    %c0_1 = arith.constant 0 : index
    %0 = vector.load %arg1[%c0, %c0_0, %c0_1] : memref<1x16x4xbf16, #tpu.memory_space<vmem>>, vector<1x16x4xbf16>
    %1 = arith.extf %0 : vector<1x16x4xbf16> to vector<1x16x4xf32>
    %c0_2 = arith.constant 0 : index
    %c0_3 = arith.constant 0 : index
    %2 = vector.load %arg2[%c0_2, %c0_3] : memref<1x4xf32, #tpu.memory_space<vmem>>, vector<1x4xf32>
    %3 = vector.shape_cast %2 : vector<1x4xf32> to vector<1x1x4xf32>
    %4 = vector.broadcast %3 : vector<1x1x4xf32> to vector<1x16x4xf32>
    %5 = arith.mulf %1, %4 : vector<1x16x4xf32>
    %c0_4 = arith.constant 0 : index
    %c0_5 = arith.constant 0 : index
    %6 = vector.load %arg3[%c0_4, %c0_5] : memref<1x4xf32, #tpu.memory_space<vmem>>, vector<1x4xf32>
    %7 = vector.shape_cast %6 : vector<1x4xf32> to vector<1x1x4xf32>
    %8 = vector.broadcast %7 : vector<1x1x4xf32> to vector<1x16x4xf32>
    %9 = arith.addf %5, %8 : vector<1x16x4xf32>
    %cst = arith.constant 0.000000e+00 : f32
    %10 = vector.broadcast %cst : f32 to vector<1x16x4xf32>
    %11 = arith.maximumf %9, %10 : vector<1x16x4xf32>
    %12 = arith.truncf %11 : vector<1x16x4xf32> to vector<1x16x4xbf16>
    %13 = vector.shape_cast %12 : vector<1x16x4xbf16> to vector<16x4xbf16>
    %c0_6 = arith.constant 0 : index
    %c0_7 = arith.constant 0 : index
    %14 = vector.load %arg4[%c0_6, %c0_7] : memref<4x12xbf16, #tpu.memory_space<vmem>>, vector<4x12xbf16>
    %cst_8 = arith.constant dense<0.000000e+00> : vector<16x12xf32>
    %15 = tpu.matmul %13, %14, %cst_8 {dimension_numbers = #tpu.dot_dimension_numbers<[1], [0], [0], [1], [0, 0, 1, 1], [], []>} : vector<16x4xbf16>, vector<4x12xbf16>, vector<16x12xf32> -> vector<16x12xf32>
    %16 = vector.shape_cast %15 : vector<16x12xf32> to vector<1x16x12xf32>
    %17 = vector.extract_strided_slice %16 {offsets = [0, 0, 0], sizes = [1, 16, 4], strides = [1, 1, 1]} : vector<1x16x12xf32> to vector<1x16x4xf32>
    %18 = vector.extract_strided_slice %16 {offsets = [0, 0, 4], sizes = [1, 16, 4], strides = [1, 1, 1]} : vector<1x16x12xf32> to vector<1x16x4xf32>
    %19 = vector.extract_strided_slice %16 {offsets = [0, 0, 8], sizes = [1, 16, 4], strides = [1, 1, 1]} : vector<1x16x12xf32> to vector<1x16x4xf32>
    %cst_9 = arith.constant 0.000000e+00 : f32
    %20 = vector.broadcast %cst_9 : f32 to vector<1x1x4xf32>
    %21 = vector.extract_strided_slice %17 {offsets = [0, 0, 0], sizes = [1, 15, 4], strides = [1, 1, 1]} : vector<1x16x4xf32> to vector<1x15x4xf32>
    %22 = tpu.concatenate %20, %21 in 1 : vector<1x1x4xf32>, vector<1x15x4xf32> -> vector<1x16x4xf32>
    %23 = arith.addf %22, %18 : vector<1x16x4xf32>
    %24 = vector.extract_strided_slice %19 {offsets = [0, 1, 0], sizes = [1, 15, 4], strides = [1, 1, 1]} : vector<1x16x4xf32> to vector<1x15x4xf32>
    %25 = tpu.concatenate %24, %20 in 1 : vector<1x15x4xf32>, vector<1x1x4xf32> -> vector<1x16x4xf32>
    %26 = arith.addf %23, %25 : vector<1x16x4xf32>
    %27 = arith.truncf %26 : vector<1x16x4xf32> to vector<1x16x4xbf16>
    %c0_10 = arith.constant 0 : index
    %c0_11 = arith.constant 0 : index
    %c0_12 = arith.constant 0 : index
    %28 = vector.load %arg5[%c0_10, %c0_11, %c0_12] : memref<1x16x4xbf16, #tpu.memory_space<vmem>>, vector<1x16x4xbf16>
    tpu.vector_store %arg5[%c0_10, %c0_11, %c0_12], %27 {strides = array<i32>} : memref<1x16x4xbf16, #tpu.memory_space<vmem>>, vector<1x16x4xbf16>,
    %29 = arith.extf %27 : vector<1x16x4xbf16> to vector<1x16x4xf32>
    %cst_13 = arith.constant dense<0.000000e+00> : vector<4xf32>
    %30 = vector.multi_reduction <add>, %29, %cst_13 [0, 1] : vector<1x16x4xf32> to vector<4xf32>
    %31 = vector.shape_cast %30 : vector<4xf32> to vector<1x1x4xf32>
    %32 = arith.mulf %29, %29 : vector<1x16x4xf32>
    %cst_14 = arith.constant dense<0.000000e+00> : vector<4xf32>
    %33 = vector.multi_reduction <add>, %32, %cst_14 [0, 1] : vector<1x16x4xf32> to vector<4xf32>
    %34 = vector.shape_cast %33 : vector<4xf32> to vector<1x1x4xf32>
    %35 = tpu.concatenate %31, %34 in 1 : vector<1x1x4xf32>, vector<1x1x4xf32> -> vector<1x2x4xf32>
    %c0_15 = arith.constant 0 : index
    %c0_16 = arith.constant 0 : index
    %c0_17 = arith.constant 0 : index
    %36 = vector.load %arg6[%c0_15, %c0_16, %c0_17] : memref<1x2x4xf32, #tpu.memory_space<vmem>>, vector<1x2x4xf32>
    tpu.vector_store %arg6[%c0_15, %c0_16, %c0_17], %35 {strides = array<i32>} : memref<1x2x4xf32, #tpu.memory_space<vmem>>, vector<1x2x4xf32>,
    return
  }
  func.func @transform_0(%arg0: i32) -> (i32, i32, i32) {
    %c0_i32 = arith.constant 0 : i32
    %c0_i32_0 = arith.constant 0 : i32
    %c0_i32_1 = arith.constant 0 : i32
    return %arg0, %c0_i32, %c0_i32_0 : i32, i32, i32
  }
  func.func @transform_1(%arg0: i32) -> (i32, i32) {
    %c0_i32 = arith.constant 0 : i32
    %c0_i32_0 = arith.constant 0 : i32
    %c0_i32_1 = arith.constant 0 : i32
    return %c0_i32, %c0_i32_0 : i32, i32
  }
  func.func @transform_2(%arg0: i32) -> (i32, i32) {
    %c0_i32 = arith.constant 0 : i32
    %c0_i32_0 = arith.constant 0 : i32
    %c0_i32_1 = arith.constant 0 : i32
    return %c0_i32, %c0_i32_0 : i32, i32
  }
  func.func @transform_3(%arg0: i32) -> (i32, i32) {
    %c0_i32 = arith.constant 0 : i32
    %c0_i32_0 = arith.constant 0 : i32
    %c0_i32_1 = arith.constant 0 : i32
    return %c0_i32, %c0_i32_0 : i32, i32
  }
  func.func @transform_4(%arg0: i32) -> (i32, i32, i32) {
    %c0_i32 = arith.constant 0 : i32
    %c0_i32_0 = arith.constant 0 : i32
    %c0_i32_1 = arith.constant 0 : i32
    return %arg0, %c0_i32, %c0_i32_0 : i32, i32, i32
  }
  func.func @transform_5(%arg0: i32) -> (i32, i32, i32) {
    %c0_i32 = arith.constant 0 : i32
    %c0_i32_0 = arith.constant 0 : i32
    %c0_i32_1 = arith.constant 0 : i32
    return %arg0, %c0_i32, %c0_i32_0 : i32, i32, i32
  }
}

</mosaic_0001>

<llo_original>
// kernel: up_forward.5
$region0: #{up_forward.5}
  #allocation0 [shape = 'u32[]', space=smem, size = 0x4, offset = 0x4, fixed_abs, tag = 'smem constant byte address 0x4 - core index']
  #allocation1 [shape = 'u32[144,128]{1,0:T(1,128)}', space=vmem, size = 0x12000, scoped, tag = 'internal scratch']
  %s0 = inlined_call_operand.vmem [shape: bf16[2,16,4], index: 0, kind: input, shape index: {}]
  %s1 = inlined_call_operand.vmem [shape: f32[1,4], index: 1, kind: input, shape index: {}]
  %s2 = inlined_call_operand.vmem [shape: f32[1,4], index: 2, kind: input, shape index: {}]
  %s3 = inlined_call_operand.hbm [shape: f32[2,4,16], index: 3, kind: output, shape index: {}]
  %s4 = sld [smem:[#allocation0]]
  $region45: #{up_forward.5} parent=0
    _
  %s6 = ssub.s32 1, %s4
  %s7 = scalar_select 0, %s6, %s4
  $region1: #{up_forward.5} parent=0
    #allocation2 [shape = 'u8[4096]{0}', space=vmem, size = 0x1000, scoped, tag = 'output window, operand 0']
    #allocation3 [shape = 's32[2]{0}', space=sflag, size = 0x8, scoped, tag = 'scoped memory for up_forward.5']
    %8 = vsyncpa [#allocation3], 0
    %s9 = scalar_lea.sflag [#allocation3], 1
    %10 = vsyncpa %s9, 0
    loop: start=0, step=1, limit=4
    $region2: #{up_forward.5} parent=1 // loop_pre_header
      _
    $region3: #{up_forward.5} parent=1 // loop_header
      %s12 = sphi 0, %s16
      %p13 = scmp.ge.s32.totalorder %s12, 4
      %s22 = sphi 0, %s24
      %s25 = sphi 0, %s22
      %s26 = sphi 0, %s25
      %s42 = sphi 0, %s26
      %s46 = sphi 0, %s46
      %s48 = sphi 0, %s46
      %s49 = sphi 0, %s48
      %s63 = sphi 0, %s49
      %s67 = sphi 0, %s67
      %s69 = sphi 0, %s67
      %s70 = sphi 0, %s69
      %s84 = sphi 0, %s70
      %s90 = sphi 0, %s92
      %s93 = sphi 0, %s90
      %s94 = sphi 0, %s93
      %s110 = sphi 0, %s94
    $region4: #{up_forward.5} parent=1 // loop_header_branch
      %15 = sbr.rel (%p13) target = $region8
    $region5: #{up_forward.5} parent=1 // loop_body
      %s17 = ssub.s32 %s12, 1
      %s18 = ssub.s32 %s12, 2
      %s19 = sadd.s32 %s12, 1
      %s20 = ssub.s32 %s12, %s19
      %p21 = scmp.eq.s32.totalorder %s20, 0
      %s23 = sadd.s32 %s22, 1
      %s24 = scalar_select %p21, %s22, %s23
      %p27 = pneg %p21
      %p28 = scmp.eq.s32.totalorder %s12, 1
      %p29 = por %p27, %p28
      %p30 = scmp.ne.s32.totalorder %s22, %s25
      %p31 = scmp.eq.s32.totalorder %s12, 0
      %p32 = por %p30, %p31
      %p33 = scmp.ne.s32.totalorder %s22, %s25
      %p34 = scmp.eq.s32.totalorder %s17, 1
      %p35 = por %p33, %p34
      %p36 = scmp.ne.s32.totalorder %s25, %s26
      %p37 = scmp.eq.s32.totalorder %s17, 0
      %p38 = por %p36, %p37
      %p39 = scmp.ne.s32.totalorder %s25, %s26
      %p40 = scmp.eq.s32.totalorder %s18, 1
      %p41 = por %p39, %p40
      %p43 = scmp.ne.s32.totalorder %s26, %s42
      %p44 = scmp.eq.s32.totalorder %s18, 0
      %p45 = por %p43, %p44
      %s47 = sadd.s32 %s46, 1
      %p50 = scmp.eq.s32.totalorder %s12, 1
      %p51 = scmp.ne.s32.totalorder %s46, %s48
      %p52 = scmp.eq.s32.totalorder %s12, 0
      %p53 = por %p51, %p52
      %p54 = scmp.ne.s32.totalorder %s46, %s48
      %p55 = scmp.eq.s32.totalorder %s17, 1
      %p56 = por %p54, %p55
      %p57 = scmp.ne.s32.totalorder %s48, %s49
      %p58 = scmp.eq.s32.totalorder %s17, 0
      %p59 = por %p57, %p58
      %p60 = scmp.ne.s32.totalorder %s48, %s49
      %p61 = scmp.eq.s32.totalorder %s18, 1
      %p62 = por %p60, %p61
      %p64 = scmp.ne.s32.totalorder %s49, %s63
      %p65 = scmp.eq.s32.totalorder %s18, 0
      %p66 = por %p64, %p65
      %s68 = sadd.s32 %s67, 1
      %p71 = scmp.eq.s32.totalorder %s12, 1
      %p72 = scmp.ne.s32.totalorder %s67, %s69
      %p73 = scmp.eq.s32.totalorder %s12, 0
      %p74 = por %p72, %p73
      %p75 = scmp.ne.s32.totalorder %s67, %s69
      %p76 = scmp.eq.s32.totalorder %s17, 1
      %p77 = por %p75, %p76
      %p78 = scmp.ne.s32.totalorder %s69, %s70
      %p79 = scmp.eq.s32.totalorder %s17, 0
      %p80 = por %p78, %p79
      %p81 = scmp.ne.s32.totalorder %s69, %s70
      %p82 = scmp.eq.s32.totalorder %s18, 1
      %p83 = por %p81, %p82
      %p85 = scmp.ne.s32.totalorder %s70, %s84
      %p86 = scmp.eq.s32.totalorder %s18, 0
      %p87 = por %p85, %p86
      %s88 = ssub.s32 %s12, %s19
      %p89 = scmp.eq.s32.totalorder %s88, 0
      %s91 = sadd.s32 %s90, 1
      %s92 = scalar_select %p89, %s90, %s91
      %p95 = pneg %p89
      %p96 = scmp.eq.s32.totalorder %s12, 1
      %p97 = por %p95, %p96
      %p98 = scmp.ne.s32.totalorder %s90, %s93
      %p99 = scmp.eq.s32.totalorder %s12, 0
      %p100 = por %p98, %p99
      %p101 = scmp.ne.s32.totalorder %s90, %s93
      %p102 = scmp.eq.s32.totalorder %s17, 1
      %p103 = por %p101, %p102
      %p104 = scmp.ne.s32.totalorder %s93, %s94
      %p105 = scmp.eq.s32.totalorder %s17, 0
      %p106 = por %p104, %p105
      %p107 = scmp.ne.s32.totalorder %s93, %s94
      %p108 = scmp.eq.s32.totalorder %s18, 1
      %p109 = por %p107, %p108
      %p111 = scmp.ne.s32.totalorder %s94, %s110
      %p112 = scmp.eq.s32.totalorder %s18, 0
      %p113 = por %p111, %p112
      %p114 = scmp.le.s32.totalorder 1, %s12
      %p115 = scmp.lt.s32.totalorder %s12, 3
      %p116 = pnand %p114, %p115
      %p117 = pneg %p116
      // Predicated region
      $region9: #{up_forward.5} parent=5 // pred_check
        _
      $region10: #{up_forward.5} parent=5 // pred_check_branch
        %119 = sbr.rel (%p116) target = $region12
      $region11: #{up_forward.5} parent=5 // pred_region
        %s120 = ssub.s32 %s12, 1
        // Predicated region
        $region13: #{up_forward.5} parent=11 // pred_check
          %p121 = pneg %p59
        $region14: #{up_forward.5} parent=11 // pred_check_branch
          %123 = sbr.rel (%p121) target = $region16
        $region15: #{up_forward.5} parent=11 // pred_region
          _
        $region16: #{up_forward.5} parent=11 // pred_fallthru
          _
        // Predicated region
        $region17: #{up_forward.5} parent=11 // pred_check
          %p124 = pneg %p80
        $region18: #{up_forward.5} parent=11 // pred_check_branch
          %126 = sbr.rel (%p124) target = $region20
        $region19: #{up_forward.5} parent=11 // pred_region
          _
        $region20: #{up_forward.5} parent=11 // pred_fallthru
          _
      $region12: #{up_forward.5} parent=5 // pred_fallthru
        _
      %p127 = scmp.lt.s32.totalorder %s12, 2
      // Predicated region
      $region21: #{up_forward.5} parent=5 // pred_check
        %p128 = pneg %p127
      $region22: #{up_forward.5} parent=5 // pred_check_branch
        %130 = sbr.rel (%p128) target = $region24
      $region23: #{up_forward.5} parent=5 // pred_region
        // Predicated region
        $region25: #{up_forward.5} parent=23 // pred_check
          %p131 = pneg %p32
        $region26: #{up_forward.5} parent=23 // pred_check_branch
          %133 = sbr.rel (%p131) target = $region28
        $region27: #{up_forward.5} parent=23 // pred_region
          %p134 = scmp.lt.s32.totalorder %s12, 1
          %s135 = scalar_select %p134, %s12, 1
          %s136 = smul.addr %s135, 2
          %s137 = smul.addr %s136, 4
          %s138 = scalar_lea.vmem %s0, %s137
        $region28: #{up_forward.5} parent=23 // pred_fallthru
          _
      $region24: #{up_forward.5} parent=5 // pred_fallthru
        _
      %p139 = scmp.le.s32.totalorder 1, %s12
      %p140 = scmp.lt.s32.totalorder %s12, 3
      %p141 = pnand %p139, %p140
      %p142 = pneg %p141
      // Predicated region
      $region29: #{up_forward.5} parent=5 // pred_check
        _
      $region30: #{up_forward.5} parent=5 // pred_check_branch
        %144 = sbr.rel (%p141) target = $region32
      $region31: #{up_forward.5} parent=5 // pred_region
        %s145 = ssub.s32 %s12, 1
        %p146 = scmp.lt.s32.totalorder %s17, 1
        %s147 = scalar_select %p146, %s17, 1
        %s148 = smul.addr %s147, 2
        %s149 = smul.addr %s148, 4
        %s150 = scalar_lea.vmem %s0, %s149
        %p151 = pneg %p38
        %p152 = pneg %p35
        %p153 = pneg %p59
        %p154 = pneg %p56
        %p155 = pneg %p80
        %p156 = pneg %p77
        %p157 = pneg %p106
        %p158 = pneg %p103
        %s159 = sand.u32 %s93, 1
        %s160 = scalar_lea.sflag [#allocation3], %s159
        %s161 = sand.u32 %s93, 1
        %s162 = smul.addr %s161, 4
        %s163 = scalar_lea.vmem [#allocation2], %s162
        %p164 = scmp.lt.s32.totalorder %s17, 1
        %s165 = scalar_select %p164, %s17, 1
        %s166 = smul.addr %s165, 2
        %s167 = smul.addr %s166, 4
        %s168 = scalar_lea.vmem %s0, %s167
        %v169 = vld [vmem:[%s168] sm:$0xf]
        %v170 = vld [vmem:[%s168 + $0x4] sm:$0xf]
        %v171 = vunpack.c.l.bf16 %v169
        %v172 = vunpack.c.l.bf16 %v170
        %v173 = vld [vmem:[%s1] sm:$0x1]
        %v175 = vlaneseq
        %v176 = vshrl.u32 %v175, 7
        %v177 = vsub.s32 0, %v176
        %v178 = vrot.slane %v173, %v177
        %v180 = vmul.f32 %v171, %v178
        %v181 = vmul.f32 %v172, %v178
        %v182 = vld [vmem:[%s2] sm:$0x1]
        %v184 = vlaneseq
        %v185 = vshrl.u32 %v184, 7
        %v186 = vsub.s32 0, %v185
        %v187 = vrot.slane %v182, %v186
        %v189 = vadd.f32 %v180, %v187
        %v190 = vadd.f32 %v181, %v187
        %v191 = vmax.f32 %v189, 0.0
        %v192 = vmax.f32 %v190, 0.0
        %193 = vxpose.xlu0.b32.start [1/16] %v191, 128
        %194 = vxpose.xlu0.b32.cont [2/16] %v192, 128
        %195 = vxpose.xlu0.b32.cont [3/16] 0.0, 128
        %196 = vxpose.xlu0.b32.cont [4/16] 0.0, 128
        %197 = vxpose.xlu0.b32.cont [5/16] 0.0, 128
        %198 = vxpose.xlu0.b32.cont [6/16] 0.0, 128
        %199 = vxpose.xlu0.b32.cont [7/16] 0.0, 128
        %200 = vxpose.xlu0.b32.cont [8/16] 0.0, 128
        %201 = vxpose.xlu0.b32.cont [9/16] 0.0, 128
        %202 = vxpose.xlu0.b32.cont [10/16] 0.0, 128
        %203 = vxpose.xlu0.b32.cont [11/16] 0.0, 128
        %204 = vxpose.xlu0.b32.cont [12/16] 0.0, 128
        %205 = vxpose.xlu0.b32.cont [13/16] 0.0, 128
        %206 = vxpose.xlu0.b32.cont [14/16] 0.0, 128
        %207 = vxpose.xlu0.b32.cont [15/16] 0.0, 128
        %208 = vxpose.xlu0.b32.end [16/16] 0.0, 128
        %v209 = vpop.trf.xlu0
        %v210 = vpop.trf.xlu0
        %v211 = vpop.trf.xlu0
        %v212 = vpop.trf.xlu0
        %v213 = vpop.trf.xlu0
        %v214 = vpop.trf.xlu0
        %v215 = vpop.trf.xlu0
        %v216 = vpop.trf.xlu0
        %v217 = vpop.trf.xlu0
        %v218 = vpop.trf.xlu0
        %v219 = vpop.trf.xlu0
        %v220 = vpop.trf.xlu0
        %v221 = vpop.trf.xlu0
        %v222 = vpop.trf.xlu0
        %v223 = vpop.trf.xlu0
        %v224 = vpop.trf.xlu0
        %vm225 = vcmask 125952
        %226 = vst.msk [vmem:[%s163] sm:$0xf] %vm225, %v209
        %s227 = sand.u32 %s93, 1
        %s228 = scalar_lea.sflag [#allocation3], %s227
        %s229 = sand.u32 %s93, 1
        %s230 = smul.addr %s229, 4
        %s231 = scalar_lea.vmem [#allocation2], %s230
        // Predicated region
        $region33: #{up_forward.5} parent=31 // pred_check
          %p232 = pneg %p103
        $region34: #{up_forward.5} parent=31 // pred_check_branch
          %234 = sbr.rel (%p232) target = $region36
        $region35: #{up_forward.5} parent=31 // pred_region
          %s236 = ssub.s32 64, 64
          %237 = vsyncadd %s228, %s236
          %s238 = smul.addr %s17, 64
          %s239 = scalar_lea.hbm %s3, %s238
          %s241 = sshll.u32 %s231, 4
          %s242 = int_to_ptr.vmem [resolvable:$true] %s241
          %244 = dma.vmem_to_hbm [thread:$0]  %s242, 64, %s239, %s228
        $region36: #{up_forward.5} parent=31 // pred_fallthru
          _
      $region32: #{up_forward.5} parent=5 // pred_fallthru
        _
      %p245 = scmp.le.s32.totalorder 2, %s12
      // Predicated region
      $region37: #{up_forward.5} parent=5 // pred_check
        %p246 = pneg %p245
      $region38: #{up_forward.5} parent=5 // pred_check_branch
        %248 = sbr.rel (%p246) target = $region40
      $region39: #{up_forward.5} parent=5 // pred_region
        %s249 = ssub.s32 %s12, 2
        // Predicated region
        $region41: #{up_forward.5} parent=39 // pred_check
          %p250 = pneg %p109
        $region42: #{up_forward.5} parent=39 // pred_check_branch
          %252 = sbr.rel (%p250) target = $region44
        $region43: #{up_forward.5} parent=39 // pred_region
          %s253 = sand.u32 %s94, 1
          %s254 = scalar_lea.sflag [#allocation3], %s253
          %s255 = sand.u32 %s94, 1
          %s256 = smul.addr %s255, 4
          %s257 = scalar_lea.vmem [#allocation2], %s256
          %258 = dma.done %s254, 64
        $region44: #{up_forward.5} parent=39 // pred_fallthru
          _
      $region40: #{up_forward.5} parent=5 // pred_fallthru
        _
    $region6: #{up_forward.5} parent=1 // loop_footer
      %s16 = sadd.s32 1, %s12
    $region7: #{up_forward.5} parent=1 // loop_footer_branch
      %11 = sbr.rel target = $region3
    $region8: #{up_forward.5} parent=1 // loop_exit
      _
    %259 = vsyncpa [#allocation3], 1
    %s260 = scalar_lea.sflag [#allocation3], 1
    %261 = vsyncpa %s260, 1

// kernel: up_forward.4
$region0: #{up_forward.4}
  #allocation0 [shape = 'u32[]', space=smem, size = 0x4, offset = 0x4, fixed_abs, tag = 'smem constant byte address 0x4 - core index']
  #allocation1 [shape = 'u32[144,128]{1,0:T(1,128)}', space=vmem, size = 0x12000, scoped, tag = 'internal scratch']
  %s0 = inlined_call_operand.vmem [shape: bf16[2,16,4], index: 0, kind: input, shape index: {}]
  %s1 = inlined_call_operand.vmem [shape: f32[1,4], index: 1, kind: input, shape index: {}]
  %s2 = inlined_call_operand.vmem [shape: f32[1,4], index: 2, kind: input, shape index: {}]
  %s3 = inlined_call_operand.vmem [shape: bf16[4,12], index: 3, kind: input, shape index: {}]
  %s4 = inlined_call_operand.vmem [shape: bf16[2,16,4], index: 4, kind: output, shape index: {0}]
  %s5 = inlined_call_operand.vmem [shape: f32[2,2,4], index: 5, kind: output, shape index: {1}]
  %6 = xla_tuple %s4, %s5
  %s7 = sld [smem:[#allocation0]]
  $region57: #{up_forward.4} parent=0
    _
  %s9 = ssub.s32 1, %s7
  %s10 = scalar_select 0, %s9, %s7
  loop: start=0, step=1, limit=4
  $region2: #{up_forward.4} parent=0 // loop_pre_header
    _
  $region3: #{up_forward.4} parent=0 // loop_header
    %s12 = sphi 0, %s16
    %p13 = scmp.ge.s32.totalorder %s12, 4
    %s22 = sphi 0, %s24
    %s25 = sphi 0, %s22
    %s26 = sphi 0, %s25
    %s42 = sphi 0, %s26
    %s46 = sphi 0, %s46
    %s48 = sphi 0, %s46
    %s49 = sphi 0, %s48
    %s63 = sphi 0, %s49
    %s67 = sphi 0, %s67
    %s69 = sphi 0, %s67
    %s70 = sphi 0, %s69
    %s84 = sphi 0, %s70
    %s88 = sphi 0, %s88
    %s90 = sphi 0, %s88
    %s91 = sphi 0, %s90
    %s105 = sphi 0, %s91
    %s111 = sphi 0, %s113
    %s114 = sphi 0, %s111
    %s115 = sphi 0, %s114
    %s131 = sphi 0, %s115
    %s137 = sphi 0, %s139
    %s140 = sphi 0, %s137
    %s141 = sphi 0, %s140
    %s157 = sphi 0, %s141
  $region4: #{up_forward.4} parent=0 // loop_header_branch
    %15 = sbr.rel (%p13) target = $region8
  $region5: #{up_forward.4} parent=0 // loop_body
    %s17 = ssub.s32 %s12, 1
    %s18 = ssub.s32 %s12, 2
    %s19 = sadd.s32 %s12, 1
    %s20 = ssub.s32 %s12, %s19
    %p21 = scmp.eq.s32.totalorder %s20, 0
    %s23 = sadd.s32 %s22, 1
    %s24 = scalar_select %p21, %s22, %s23
    %p27 = pneg %p21
    %p28 = scmp.eq.s32.totalorder %s12, 1
    %p29 = por %p27, %p28
    %p30 = scmp.ne.s32.totalorder %s22, %s25
    %p31 = scmp.eq.s32.totalorder %s12, 0
    %p32 = por %p30, %p31
    %p33 = scmp.ne.s32.totalorder %s22, %s25
    %p34 = scmp.eq.s32.totalorder %s17, 1
    %p35 = por %p33, %p34
    %p36 = scmp.ne.s32.totalorder %s25, %s26
    %p37 = scmp.eq.s32.totalorder %s17, 0
    %p38 = por %p36, %p37
    %p39 = scmp.ne.s32.totalorder %s25, %s26
    %p40 = scmp.eq.s32.totalorder %s18, 1
    %p41 = por %p39, %p40
    %p43 = scmp.ne.s32.totalorder %s26, %s42
    %p44 = scmp.eq.s32.totalorder %s18, 0
    %p45 = por %p43, %p44
    %s47 = sadd.s32 %s46, 1
    %p50 = scmp.eq.s32.totalorder %s12, 1
    %p51 = scmp.ne.s32.totalorder %s46, %s48
    %p52 = scmp.eq.s32.totalorder %s12, 0
    %p53 = por %p51, %p52
    %p54 = scmp.ne.s32.totalorder %s46, %s48
    %p55 = scmp.eq.s32.totalorder %s17, 1
    %p56 = por %p54, %p55
    %p57 = scmp.ne.s32.totalorder %s48, %s49
    %p58 = scmp.eq.s32.totalorder %s17, 0
    %p59 = por %p57, %p58
    %p60 = scmp.ne.s32.totalorder %s48, %s49
    %p61 = scmp.eq.s32.totalorder %s18, 1
    %p62 = por %p60, %p61
    %p64 = scmp.ne.s32.totalorder %s49, %s63
    %p65 = scmp.eq.s32.totalorder %s18, 0
    %p66 = por %p64, %p65
    %s68 = sadd.s32 %s67, 1
    %p71 = scmp.eq.s32.totalorder %s12, 1
    %p72 = scmp.ne.s32.totalorder %s67, %s69
    %p73 = scmp.eq.s32.totalorder %s12, 0
    %p74 = por %p72, %p73
    %p75 = scmp.ne.s32.totalorder %s67, %s69
    %p76 = scmp.eq.s32.totalorder %s17, 1
    %p77 = por %p75, %p76
    %p78 = scmp.ne.s32.totalorder %s69, %s70
    %p79 = scmp.eq.s32.totalorder %s17, 0
    %p80 = por %p78, %p79
    %p81 = scmp.ne.s32.totalorder %s69, %s70
    %p82 = scmp.eq.s32.totalorder %s18, 1
    %p83 = por %p81, %p82
    %p85 = scmp.ne.s32.totalorder %s70, %s84
    %p86 = scmp.eq.s32.totalorder %s18, 0
    %p87 = por %p85, %p86
    %s89 = sadd.s32 %s88, 1
    %p92 = scmp.eq.s32.totalorder %s12, 1
    %p93 = scmp.ne.s32.totalorder %s88, %s90
    %p94 = scmp.eq.s32.totalorder %s12, 0
    %p95 = por %p93, %p94
    %p96 = scmp.ne.s32.totalorder %s88, %s90
    %p97 = scmp.eq.s32.totalorder %s17, 1
    %p98 = por %p96, %p97
    %p99 = scmp.ne.s32.totalorder %s90, %s91
    %p100 = scmp.eq.s32.totalorder %s17, 0
    %p101 = por %p99, %p100
    %p102 = scmp.ne.s32.totalorder %s90, %s91
    %p103 = scmp.eq.s32.totalorder %s18, 1
    %p104 = por %p102, %p103
    %p106 = scmp.ne.s32.totalorder %s91, %s105
    %p107 = scmp.eq.s32.totalorder %s18, 0
    %p108 = por %p106, %p107
    %s109 = ssub.s32 %s12, %s19
    %p110 = scmp.eq.s32.totalorder %s109, 0
    %s112 = sadd.s32 %s111, 1
    %s113 = scalar_select %p110, %s111, %s112
    %p116 = pneg %p110
    %p117 = scmp.eq.s32.totalorder %s12, 1
    %p118 = por %p116, %p117
    %p119 = scmp.ne.s32.totalorder %s111, %s114
    %p120 = scmp.eq.s32.totalorder %s12, 0
    %p121 = por %p119, %p120
    %p122 = scmp.ne.s32.totalorder %s111, %s114
    %p123 = scmp.eq.s32.totalorder %s17, 1
    %p124 = por %p122, %p123
    %p125 = scmp.ne.s32.totalorder %s114, %s115
    %p126 = scmp.eq.s32.totalorder %s17, 0
    %p127 = por %p125, %p126
    %p128 = scmp.ne.s32.totalorder %s114, %s115
    %p129 = scmp.eq.s32.totalorder %s18, 1
    %p130 = por %p128, %p129
    %p132 = scmp.ne.s32.totalorder %s115, %s131
    %p133 = scmp.eq.s32.totalorder %s18, 0
    %p134 = por %p132, %p133
    %s135 = ssub.s32 %s12, %s19
    %p136 = scmp.eq.s32.totalorder %s135, 0
    %s138 = sadd.s32 %s137, 1
    %s139 = scalar_select %p136, %s137, %s138
    %p142 = pneg %p136
    %p143 = scmp.eq.s32.totalorder %s12, 1
    %p144 = por %p142, %p143
    %p145 = scmp.ne.s32.totalorder %s137, %s140
    %p146 = scmp.eq.s32.totalorder %s12, 0
    %p147 = por %p145, %p146
    %p148 = scmp.ne.s32.totalorder %s137, %s140
    %p149 = scmp.eq.s32.totalorder %s17, 1
    %p150 = por %p148, %p149
    %p151 = scmp.ne.s32.totalorder %s140, %s141
    %p152 = scmp.eq.s32.totalorder %s17, 0
    %p153 = por %p151, %p152
    %p154 = scmp.ne.s32.totalorder %s140, %s141
    %p155 = scmp.eq.s32.totalorder %s18, 1
    %p156 = por %p154, %p155
    %p158 = scmp.ne.s32.totalorder %s141, %s157
    %p159 = scmp.eq.s32.totalorder %s18, 0
    %p160 = por %p158, %p159
    %p161 = scmp.le.s32.totalorder 1, %s12
    %p162 = scmp.lt.s32.totalorder %s12, 3
    %p163 = pnand %p161, %p162
    %p164 = pneg %p163
    // Predicated region
    $region9: #{up_forward.4} parent=5 // pred_check
      _
    $region10: #{up_forward.4} parent=5 // pred_check_branch
      %166 = sbr.rel (%p163) target = $region12
    $region11: #{up_forward.4} parent=5 // pred_region
      %s167 = ssub.s32 %s12, 1
      // Predicated region
      $region13: #{up_forward.4} parent=11 // pred_check
        %p168 = pneg %p59
      $region14: #{up_forward.4} parent=11 // pred_check_branch
        %170 = sbr.rel (%p168) target = $region16
      $region15: #{up_forward.4} parent=11 // pred_region
        _
      $region16: #{up_forward.4} parent=11 // pred_fallthru
        _
      // Predicated region
      $region17: #{up_forward.4} parent=11 // pred_check
        %p171 = pneg %p80
      $region18: #{up_forward.4} parent=11 // pred_check_branch
        %173 = sbr.rel (%p171) target = $region20
      $region19: #{up_forward.4} parent=11 // pred_region
        _
      $region20: #{up_forward.4} parent=11 // pred_fallthru
        _
      // Predicated region
      $region21: #{up_forward.4} parent=11 // pred_check
        %p174 = pneg %p101
      $region22: #{up_forward.4} parent=11 // pred_check_branch
        %176 = sbr.rel (%p174) target = $region24
      $region23: #{up_forward.4} parent=11 // pred_region
        _
      $region24: #{up_forward.4} parent=11 // pred_fallthru
        _
    $region12: #{up_forward.4} parent=5 // pred_fallthru
      _
    %p177 = scmp.lt.s32.totalorder %s12, 2
    // Predicated region
    $region25: #{up_forward.4} parent=5 // pred_check
      %p178 = pneg %p177
    $region26: #{up_forward.4} parent=5 // pred_check_branch
      %180 = sbr.rel (%p178) target = $region28
    $region27: #{up_forward.4} parent=5 // pred_region
      // Predicated region
      $region29: #{up_forward.4} parent=27 // pred_check
        %p181 = pneg %p32
      $region30: #{up_forward.4} parent=27 // pred_check_branch
        %183 = sbr.rel (%p181) target = $region32
      $region31: #{up_forward.4} parent=27 // pred_region
        %p184 = scmp.lt.s32.totalorder %s12, 1
        %s185 = scalar_select %p184, %s12, 1
        %s186 = smul.addr %s185, 2
        %s187 = smul.addr %s186, 4
        %s188 = scalar_lea.vmem %s0, %s187
      $region32: #{up_forward.4} parent=27 // pred_fallthru
        _
    $region28: #{up_forward.4} parent=5 // pred_fallthru
      _
    %p189 = scmp.le.s32.totalorder 1, %s12
    %p190 = scmp.lt.s32.totalorder %s12, 3
    %p191 = pnand %p189, %p190
    %p192 = pneg %p191
    // Predicated region
    $region33: #{up_forward.4} parent=5 // pred_check
      _
    $region34: #{up_forward.4} parent=5 // pred_check_branch
      %194 = sbr.rel (%p191) target = $region36
    $region35: #{up_forward.4} parent=5 // pred_region
      %s195 = ssub.s32 %s12, 1
      %p196 = scmp.lt.s32.totalorder %s17, 1
      %s197 = scalar_select %p196, %s17, 1
      %s198 = smul.addr %s197, 2
      %s199 = smul.addr %s198, 4
      %s200 = scalar_lea.vmem %s0, %s199
      %p201 = pneg %p38
      %p202 = pneg %p35
      %p203 = pneg %p59
      %p204 = pneg %p56
      %p205 = pneg %p80
      %p206 = pneg %p77
      %p207 = pneg %p101
      %p208 = pneg %p98
      %p209 = pneg %p127
      %p210 = pneg %p124
      %p211 = scmp.lt.s32.totalorder %s17, 1
      %s212 = scalar_select %p211, %s17, 1
      %s213 = smul.addr %s212, 2
      %s214 = smul.addr %s213, 4
      %s215 = scalar_lea.vmem %s4, %s214
      %p216 = pneg %p153
      %p217 = pneg %p150
      %p218 = scmp.lt.s32.totalorder %s17, 1
      %s219 = scalar_select %p218, %s17, 1
      %s220 = smul.addr %s219, 2
      %s221 = scalar_lea.vmem %s5, %s220
      %p222 = scmp.lt.s32.totalorder %s17, 1
      %s223 = scalar_select %p222, %s17, 1
      %s224 = smul.addr %s223, 2
      %s225 = smul.addr %s224, 4
      %s226 = scalar_lea.vmem %s0, %s225
      %p227 = scmp.lt.s32.totalorder %s17, 1
      %s228 = scalar_select %p227, %s17, 1
      %s229 = smul.addr %s228, 2
      %s230 = smul.addr %s229, 4
      %s231 = scalar_lea.vmem %s4, %s230
      %p232 = scmp.lt.s32.totalorder %s17, 1
      %s233 = scalar_select %p232, %s17, 1
      %s234 = smul.addr %s233, 2
      %s235 = scalar_lea.vmem %s5, %s234
      %v237 = vld [vmem:[%s226] sm:$0xf]
      %v238 = vld [vmem:[%s226 + $0x4] sm:$0xf]
      %v239 = vunpack.c.l.bf16 %v237
      %v240 = vunpack.c.l.bf16 %v238
      %v241 = vld [vmem:[%s1] sm:$0x1]
      %v243 = vlaneseq
      %v244 = vshrl.u32 %v243, 7
      %v245 = vsub.s32 0, %v244
      %v246 = vrot.slane %v241, %v245
      %v248 = vmul.f32 %v239, %v246
      %v249 = vmul.f32 %v240, %v246
      %v250 = vld [vmem:[%s2] sm:$0x1]
      %v252 = vlaneseq
      %v253 = vshrl.u32 %v252, 7
      %v254 = vsub.s32 0, %v253
      %v255 = vrot.slane %v250, %v254
      %v257 = vadd.f32 %v248, %v255
      %v258 = vadd.f32 %v249, %v255
      %v259 = vmax.f32 %v257, 0.0
      %v260 = vmax.f32 %v258, 0.0
      %v261 = vpack.c.bf16 %v260, %v259
      %v262 = vld [vmem:[%s3] sm:$0x3]
      %vm263 = vcmask 31744
      %v265 = vsel %vm263, %v261, 0
      %vm267 = vcmask 1041408
      %v269 = vsel %vm267, %v262, 0
      %271 = vmatprep.subr.bf16.mxu0 0
      %272 = vmatpush1.bf16.msra.mxu0 %v269
      %273 = vmatprep.subr.bf16.mxu0 0
      %274 = vmatpush1.bf16.msra.mxu0 0
      %275 = vmatprep.subr.bf16.mxu0 0
      %276 = vmatpush1.bf16.msra.mxu0 0
      %277 = vmatprep.subr.bf16.mxu0 0
      %278 = vmatpush1.bf16.msra.mxu0 0
      %279 = vmatprep.subr.bf16.mxu0 0
      %280 = vmatpush1.bf16.msra.mxu0 0
      %281 = vmatprep.subr.bf16.mxu0 0
      %282 = vmatpush1.bf16.msra.mxu0 0
      %283 = vmatprep.subr.bf16.mxu0 0
      %284 = vmatpush1.bf16.msra.mxu0 0
      %285 = vmatprep.subr.bf16.mxu0 0
      %286 = vmatpush1.bf16.msra.mxu0 0
      %287 = vmatprep.subr.bf16.mxu0 0
      %288 = vmatpush1.bf16.msra.mxu0 0
      %289 = vmatprep.subr.bf16.mxu0 0
      %290 = vmatpush1.bf16.msra.mxu0 0
      %291 = vmatprep.subr.bf16.mxu0 0
      %292 = vmatpush1.bf16.msra.mxu0 0
      %293 = vmatprep.subr.bf16.mxu0 0
      %294 = vmatpush1.bf16.msra.mxu0 0
      %295 = vmatprep.subr.bf16.mxu0 0
      %296 = vmatpush1.bf16.msra.mxu0 0
      %297 = vmatprep.subr.bf16.mxu0 0
      %298 = vmatpush1.bf16.msra.mxu0 0
      %299 = vmatprep.subr.bf16.mxu0 0
      %300 = vmatpush1.bf16.msra.mxu0 0
      %301 = vmatprep.subr.bf16.mxu0 0
      %302 = vmatpush1.bf16.msra.mxu0 0
      %303 = vmatprep.mubr.bf16.mxu0 0
      %304 = vmatmul.mubr.bf16.gmra.mrb[0].mxu0 %v265
      %v305 = vpop.f32.mrb[0].mxu0
      %v306 = vadd.f32 0.0, %v305
      %v307 = vpop.f32.mrb[0].mxu0
      %v308 = vpop.f32.mrb[0].mxu0
      %v309 = vadd.f32 0.0, %v308
      %v310 = vpop.f32.mrb[0].mxu0
      %311 = vdwg.mxu0
      %vm314 = vcmask 1040384
      %v315 = vrot.slane %v306, 7
      %v316 = vrot.slane %v309, 7
      %v317 = vsel %vm314, %v315, %v316
      %v320 = vsel %vm314, 0.0, %v315
      %321 = vrot.lane.b32.xlu0 %v306, 124
      %v322 = vpop.permute.xlu0 %321
      %323 = vrot.lane.b32.xlu0 %v309, 124
      %v324 = vpop.permute.xlu0 %323
      %v327 = vadd.f32 %v320, %v322
      %v328 = vadd.f32 %v317, %v324
      %vm329 = vcmask 1046528
      %v330 = vrot.slane %v306, 1
      %v331 = vrot.slane %v309, 1
      %v332 = vsel %vm329, %v330, %v331
      %v334 = vsel %vm329, %v331, 0.0
      %336 = vrot.lane.b32.xlu0 %v332, 120
      %v337 = vpop.permute.xlu0 %336
      %338 = vrot.lane.b32.xlu0 %v334, 120
      %v339 = vpop.permute.xlu0 %338
      %v342 = vadd.f32 %v327, %v337
      %v343 = vadd.f32 %v328, %v339
      %v344 = vpack.c.bf16 %v343, %v342
      %v346 = vunpack.c.l.b16 %v344
      %v347 = vunpack.c.h.b16 %v344
      %v348 = vpack.c.b16 %v346, %v346
      %v349 = vpack.c.b16 %v347, %v347
      %vm352 = vcmask 27648
      %353 = vst.msk [vmem:[%s231] sm:$0xf] %vm352, %v348
      %354 = vst.msk [vmem:[%s231 + $0x4] sm:$0xf] %vm352, %v349
      %v355 = vunpack.c.l.bf16 %v344
      %v356 = vunpack.c.h.bf16 %v344
      %v357 = vsel %vm263, %v355, 0.0
      %v358 = vsel %vm263, %v356, 0.0
      %v359 = vadd.f32 %v357, %v358
      %v360 = vrot.slane %v359, 4
      %v361 = vadd.f32 %v359, %v360
      %v362 = vrot.slane %v361, 2
      %v363 = vadd.f32 %v361, %v362
      %v364 = vrot.slane %v363, 1
      %v365 = vadd.f32 %v363, %v364
      %v366 = vmul.f32 %v355, %v355
      %v367 = vmul.f32 %v356, %v356
      %v368 = vsel %vm263, %v366, 0.0
      %v369 = vsel %vm263, %v367, 0.0
      %v370 = vadd.f32 %v368, %v369
      %v371 = vrot.slane %v370, 4
      %v372 = vadd.f32 %v370, %v371
      %v373 = vrot.slane %v372, 2
      %v374 = vadd.f32 %v372, %v373
      %v375 = vrot.slane %v374, 1
      %v376 = vadd.f32 %v374, %v375
      %v377 = vsel %vm314, %v365, %v376
      %vm378 = vcmask 25600
      %379 = vst.msk [vmem:[%s235] sm:$0x3] %vm378, %v377
      %p380 = scmp.lt.s32.totalorder %s17, 1
      %s381 = scalar_select %p380, %s17, 1
      %s382 = smul.addr %s381, 2
      %s383 = smul.addr %s382, 4
      %s384 = scalar_lea.vmem %s4, %s383
      %p385 = scmp.lt.s32.totalorder %s17, 1
      %s386 = scalar_select %p385, %s17, 1
      %s387 = smul.addr %s386, 2
      %s388 = scalar_lea.vmem %s5, %s387
      // Predicated region
      $region37: #{up_forward.4} parent=35 // pred_check
        %p389 = pneg %p124
      $region38: #{up_forward.4} parent=35 // pred_check_branch
        %391 = sbr.rel (%p389) target = $region40
      $region39: #{up_forward.4} parent=35 // pred_region
        _
      $region40: #{up_forward.4} parent=35 // pred_fallthru
        _
      // Predicated region
      $region41: #{up_forward.4} parent=35 // pred_check
        %p392 = pneg %p150
      $region42: #{up_forward.4} parent=35 // pred_check_branch
        %394 = sbr.rel (%p392) target = $region44
      $region43: #{up_forward.4} parent=35 // pred_region
        _
      $region44: #{up_forward.4} parent=35 // pred_fallthru
        _
    $region36: #{up_forward.4} parent=5 // pred_fallthru
      _
    %p395 = scmp.le.s32.totalorder 2, %s12
    // Predicated region
    $region45: #{up_forward.4} parent=5 // pred_check
      %p396 = pneg %p395
    $region46: #{up_forward.4} parent=5 // pred_check_branch
      %398 = sbr.rel (%p396) target = $region48
    $region47: #{up_forward.4} parent=5 // pred_region
      %s399 = ssub.s32 %s12, 2
      // Predicated region
      $region49: #{up_forward.4} parent=47 // pred_check
        %p400 = pneg %p130
      $region50: #{up_forward.4} parent=47 // pred_check_branch
        %402 = sbr.rel (%p400) target = $region52
      $region51: #{up_forward.4} parent=47 // pred_region
        %p403 = scmp.lt.s32.totalorder %s18, 1
        %s404 = scalar_select %p403, %s18, 1
        %s405 = smul.addr %s404, 2
        %s406 = smul.addr %s405, 4
        %s407 = scalar_lea.vmem %s4, %s406
      $region52: #{up_forward.4} parent=47 // pred_fallthru
        _
      // Predicated region
      $region53: #{up_forward.4} parent=47 // pred_check
        %p408 = pneg %p156
      $region54: #{up_forward.4} parent=47 // pred_check_branch
        %410 = sbr.rel (%p408) target = $region56
      $region55: #{up_forward.4} parent=47 // pred_region
        %p411 = scmp.lt.s32.totalorder %s18, 1
        %s412 = scalar_select %p411, %s18, 1
        %s413 = smul.addr %s412, 2
        %s414 = scalar_lea.vmem %s5, %s413
      $region56: #{up_forward.4} parent=47 // pred_fallthru
        _
    $region48: #{up_forward.4} parent=5 // pred_fallthru
      _
  $region6: #{up_forward.4} parent=0 // loop_footer
    %s16 = sadd.s32 1, %s12
  $region7: #{up_forward.4} parent=0 // loop_footer_branch
    %11 = sbr.rel target = $region3
  $region8: #{up_forward.4} parent=0 // loop_exit
    _

// kernel: up_forward.3
$region0: #{up_forward.3}
  #allocation0 [shape = 'u32[]', space=smem, size = 0x4, offset = 0x4, fixed_abs, tag = 'smem constant byte address 0x4 - core index']
  #allocation1 [shape = 'u32[144,128]{1,0:T(1,128)}', space=vmem, size = 0x12000, scoped, tag = 'internal scratch']
  %s0 = inlined_call_operand.vmem [shape: f32[2,8,8], index: 0, kind: input, shape index: {}]
  %s1 = inlined_call_operand.vmem [shape: f32[2,4,16], index: 1, kind: input, shape index: {}]
  %s2 = inlined_call_operand.vmem [shape: bf16[8,4], index: 2, kind: input, shape index: {}]
  %s3 = inlined_call_operand.vmem [shape: bf16[8,4], index: 3, kind: input, shape index: {}]
  %s4 = inlined_call_operand.vmem [shape: f32[1,4], index: 4, kind: input, shape index: {}]
  %s5 = inlined_call_operand.vmem [shape: bf16[16,8], index: 5, kind: input, shape index: {}]
  %s6 = inlined_call_operand.vmem [shape: bf16[16,8], index: 6, kind: input, shape index: {}]
  %s7 = inlined_call_operand.vmem [shape: bf16[4,12], index: 7, kind: input, shape index: {}]
  %s8 = inlined_call_operand.vmem [shape: bf16[4,12], index: 8, kind: input, shape index: {}]
  %s9 = inlined_call_operand.vmem [shape: bf16[2,16,4], index: 9, kind: output, shape index: {0}]
  %s10 = inlined_call_operand.vmem [shape: f32[2,2,4], index: 10, kind: output, shape index: {1}]
  %11 = xla_tuple %s9, %s10
  %s12 = sld [smem:[#allocation0]]
  $region77: #{up_forward.3} parent=0
    _
  %s14 = ssub.s32 1, %s12
  %s15 = scalar_select 0, %s14, %s12
  loop: start=0, step=1, limit=4
  $region2: #{up_forward.3} parent=0 // loop_pre_header
    _
  $region3: #{up_forward.3} parent=0 // loop_header
    %s17 = sphi 0, %s21
    %p18 = scmp.ge.s32.totalorder %s17, 4
    %s27 = sphi 0, %s29
    %s30 = sphi 0, %s27
    %s31 = sphi 0, %s30
    %s47 = sphi 0, %s31
    %s53 = sphi 0, %s55
    %s56 = sphi 0, %s53
    %s57 = sphi 0, %s56
    %s73 = sphi 0, %s57
    %s77 = sphi 0, %s77
    %s79 = sphi 0, %s77
    %s80 = sphi 0, %s79
    %s94 = sphi 0, %s80
    %s98 = sphi 0, %s98
    %s100 = sphi 0, %s98
    %s101 = sphi 0, %s100
    %s115 = sphi 0, %s101
    %s119 = sphi 0, %s119
    %s121 = sphi 0, %s119
    %s122 = sphi 0, %s121
    %s136 = sphi 0, %s122
    %s140 = sphi 0, %s140
    %s142 = sphi 0, %s140
    %s143 = sphi 0, %s142
    %s157 = sphi 0, %s143
    %s161 = sphi 0, %s161
    %s163 = sphi 0, %s161
    %s164 = sphi 0, %s163
    %s178 = sphi 0, %s164
    %s182 = sphi 0, %s182
    %s184 = sphi 0, %s182
    %s185 = sphi 0, %s184
    %s199 = sphi 0, %s185
    %s203 = sphi 0, %s203
    %s205 = sphi 0, %s203
    %s206 = sphi 0, %s205
    %s220 = sphi 0, %s206
    %s226 = sphi 0, %s228
    %s229 = sphi 0, %s226
    %s230 = sphi 0, %s229
    %s246 = sphi 0, %s230
    %s252 = sphi 0, %s254
    %s255 = sphi 0, %s252
    %s256 = sphi 0, %s255
    %s272 = sphi 0, %s256
  $region4: #{up_forward.3} parent=0 // loop_header_branch
    %20 = sbr.rel (%p18) target = $region8
  $region5: #{up_forward.3} parent=0 // loop_body
    %s22 = ssub.s32 %s17, 1
    %s23 = ssub.s32 %s17, 2
    %s24 = sadd.s32 %s17, 1
    %s25 = ssub.s32 %s17, %s24
    %p26 = scmp.eq.s32.totalorder %s25, 0
    %s28 = sadd.s32 %s27, 1
    %s29 = scalar_select %p26, %s27, %s28
    %p32 = pneg %p26
    %p33 = scmp.eq.s32.totalorder %s17, 1
    %p34 = por %p32, %p33
    %p35 = scmp.ne.s32.totalorder %s27, %s30
    %p36 = scmp.eq.s32.totalorder %s17, 0
    %p37 = por %p35, %p36
    %p38 = scmp.ne.s32.totalorder %s27, %s30
    %p39 = scmp.eq.s32.totalorder %s22, 1
    %p40 = por %p38, %p39
    %p41 = scmp.ne.s32.totalorder %s30, %s31
    %p42 = scmp.eq.s32.totalorder %s22, 0
    %p43 = por %p41, %p42
    %p44 = scmp.ne.s32.totalorder %s30, %s31
    %p45 = scmp.eq.s32.totalorder %s23, 1
    %p46 = por %p44, %p45
    %p48 = scmp.ne.s32.totalorder %s31, %s47
    %p49 = scmp.eq.s32.totalorder %s23, 0
    %p50 = por %p48, %p49
    %s51 = ssub.s32 %s17, %s24
    %p52 = scmp.eq.s32.totalorder %s51, 0
    %s54 = sadd.s32 %s53, 1
    %s55 = scalar_select %p52, %s53, %s54
    %p58 = pneg %p52
    %p59 = scmp.eq.s32.totalorder %s17, 1
    %p60 = por %p58, %p59
    %p61 = scmp.ne.s32.totalorder %s53, %s56
    %p62 = scmp.eq.s32.totalorder %s17, 0
    %p63 = por %p61, %p62
    %p64 = scmp.ne.s32.totalorder %s53, %s56
    %p65 = scmp.eq.s32.totalorder %s22, 1
    %p66 = por %p64, %p65
    %p67 = scmp.ne.s32.totalorder %s56, %s57
    %p68 = scmp.eq.s32.totalorder %s22, 0
    %p69 = por %p67, %p68
    %p70 = scmp.ne.s32.totalorder %s56, %s57
    %p71 = scmp.eq.s32.totalorder %s23, 1
    %p72 = por %p70, %p71
    %p74 = scmp.ne.s32.totalorder %s57, %s73
    %p75 = scmp.eq.s32.totalorder %s23, 0
    %p76 = por %p74, %p75
    %s78 = sadd.s32 %s77, 1
    %p81 = scmp.eq.s32.totalorder %s17, 1
    %p82 = scmp.ne.s32.totalorder %s77, %s79
    %p83 = scmp.eq.s32.totalorder %s17, 0
    %p84 = por %p82, %p83
    %p85 = scmp.ne.s32.totalorder %s77, %s79
    %p86 = scmp.eq.s32.totalorder %s22, 1
    %p87 = por %p85, %p86
    %p88 = scmp.ne.s32.totalorder %s79, %s80
    %p89 = scmp.eq.s32.totalorder %s22, 0
    %p90 = por %p88, %p89
    %p91 = scmp.ne.s32.totalorder %s79, %s80
    %p92 = scmp.eq.s32.totalorder %s23, 1
    %p93 = por %p91, %p92
    %p95 = scmp.ne.s32.totalorder %s80, %s94
    %p96 = scmp.eq.s32.totalorder %s23, 0
    %p97 = por %p95, %p96
    %s99 = sadd.s32 %s98, 1
    %p102 = scmp.eq.s32.totalorder %s17, 1
    %p103 = scmp.ne.s32.totalorder %s98, %s100
    %p104 = scmp.eq.s32.totalorder %s17, 0
    %p105 = por %p103, %p104
    %p106 = scmp.ne.s32.totalorder %s98, %s100
    %p107 = scmp.eq.s32.totalorder %s22, 1
    %p108 = por %p106, %p107
    %p109 = scmp.ne.s32.totalorder %s100, %s101
    %p110 = scmp.eq.s32.totalorder %s22, 0
    %p111 = por %p109, %p110
    %p112 = scmp.ne.s32.totalorder %s100, %s101
    %p113 = scmp.eq.s32.totalorder %s23, 1
    %p114 = por %p112, %p113
    %p116 = scmp.ne.s32.totalorder %s101, %s115
    %p117 = scmp.eq.s32.totalorder %s23, 0
    %p118 = por %p116, %p117
    %s120 = sadd.s32 %s119, 1
    %p123 = scmp.eq.s32.totalorder %s17, 1
    %p124 = scmp.ne.s32.totalorder %s119, %s121
    %p125 = scmp.eq.s32.totalorder %s17, 0
    %p126 = por %p124, %p125
    %p127 = scmp.ne.s32.totalorder %s119, %s121
    %p128 = scmp.eq.s32.totalorder %s22, 1
    %p129 = por %p127, %p128
    %p130 = scmp.ne.s32.totalorder %s121, %s122
    %p131 = scmp.eq.s32.totalorder %s22, 0
    %p132 = por %p130, %p131
    %p133 = scmp.ne.s32.totalorder %s121, %s122
    %p134 = scmp.eq.s32.totalorder %s23, 1
    %p135 = por %p133, %p134
    %p137 = scmp.ne.s32.totalorder %s122, %s136
    %p138 = scmp.eq.s32.totalorder %s23, 0
    %p139 = por %p137, %p138
    %s141 = sadd.s32 %s140, 1
    %p144 = scmp.eq.s32.totalorder %s17, 1
    %p145 = scmp.ne.s32.totalorder %s140, %s142
    %p146 = scmp.eq.s32.totalorder %s17, 0
    %p147 = por %p145, %p146
    %p148 = scmp.ne.s32.totalorder %s140, %s142
    %p149 = scmp.eq.s32.totalorder %s22, 1
    %p150 = por %p148, %p149
    %p151 = scmp.ne.s32.totalorder %s142, %s143
    %p152 = scmp.eq.s32.totalorder %s22, 0
    %p153 = por %p151, %p152
    %p154 = scmp.ne.s32.totalorder %s142, %s143
    %p155 = scmp.eq.s32.totalorder %s23, 1
    %p156 = por %p154, %p155
    %p158 = scmp.ne.s32.totalorder %s143, %s157
    %p159 = scmp.eq.s32.totalorder %s23, 0
    %p160 = por %p158, %p159
    %s162 = sadd.s32 %s161, 1
    %p165 = scmp.eq.s32.totalorder %s17, 1
    %p166 = scmp.ne.s32.totalorder %s161, %s163
    %p167 = scmp.eq.s32.totalorder %s17, 0
    %p168 = por %p166, %p167
    %p169 = scmp.ne.s32.totalorder %s161, %s163
    %p170 = scmp.eq.s32.totalorder %s22, 1
    %p171 = por %p169, %p170
    %p172 = scmp.ne.s32.totalorder %s163, %s164
    %p173 = scmp.eq.s32.totalorder %s22, 0
    %p174 = por %p172, %p173
    %p175 = scmp.ne.s32.totalorder %s163, %s164
    %p176 = scmp.eq.s32.totalorder %s23, 1
    %p177 = por %p175, %p176
    %p179 = scmp.ne.s32.totalorder %s164, %s178
    %p180 = scmp.eq.s32.totalorder %s23, 0
    %p181 = por %p179, %p180
    %s183 = sadd.s32 %s182, 1
    %p186 = scmp.eq.s32.totalorder %s17, 1
    %p187 = scmp.ne.s32.totalorder %s182, %s184
    %p188 = scmp.eq.s32.totalorder %s17, 0
    %p189 = por %p187, %p188
    %p190 = scmp.ne.s32.totalorder %s182, %s184
    %p191 = scmp.eq.s32.totalorder %s22, 1
    %p192 = por %p190, %p191
    %p193 = scmp.ne.s32.totalorder %s184, %s185
    %p194 = scmp.eq.s32.totalorder %s22, 0
    %p195 = por %p193, %p194
    %p196 = scmp.ne.s32.totalorder %s184, %s185
    %p197 = scmp.eq.s32.totalorder %s23, 1
    %p198 = por %p196, %p197
    %p200 = scmp.ne.s32.totalorder %s185, %s199
    %p201 = scmp.eq.s32.totalorder %s23, 0
    %p202 = por %p200, %p201
    %s204 = sadd.s32 %s203, 1
    %p207 = scmp.eq.s32.totalorder %s17, 1
    %p208 = scmp.ne.s32.totalorder %s203, %s205
    %p209 = scmp.eq.s32.totalorder %s17, 0
    %p210 = por %p208, %p209
    %p211 = scmp.ne.s32.totalorder %s203, %s205
    %p212 = scmp.eq.s32.totalorder %s22, 1
    %p213 = por %p211, %p212
    %p214 = scmp.ne.s32.totalorder %s205, %s206
    %p215 = scmp.eq.s32.totalorder %s22, 0
    %p216 = por %p214, %p215
    %p217 = scmp.ne.s32.totalorder %s205, %s206
    %p218 = scmp.eq.s32.totalorder %s23, 1
    %p219 = por %p217, %p218
    %p221 = scmp.ne.s32.totalorder %s206, %s220
    %p222 = scmp.eq.s32.totalorder %s23, 0
    %p223 = por %p221, %p222
    %s224 = ssub.s32 %s17, %s24
    %p225 = scmp.eq.s32.totalorder %s224, 0
    %s227 = sadd.s32 %s226, 1
    %s228 = scalar_select %p225, %s226, %s227
    %p231 = pneg %p225
    %p232 = scmp.eq.s32.totalorder %s17, 1
    %p233 = por %p231, %p232
    %p234 = scmp.ne.s32.totalorder %s226, %s229
    %p235 = scmp.eq.s32.totalorder %s17, 0
    %p236 = por %p234, %p235
    %p237 = scmp.ne.s32.totalorder %s226, %s229
    %p238 = scmp.eq.s32.totalorder %s22, 1
    %p239 = por %p237, %p238
    %p240 = scmp.ne.s32.totalorder %s229, %s230
    %p241 = scmp.eq.s32.totalorder %s22, 0
    %p242 = por %p240, %p241
    %p243 = scmp.ne.s32.totalorder %s229, %s230
    %p244 = scmp.eq.s32.totalorder %s23, 1
    %p245 = por %p243, %p244
    %p247 = scmp.ne.s32.totalorder %s230, %s246
    %p248 = scmp.eq.s32.totalorder %s23, 0
    %p249 = por %p247, %p248
    %s250 = ssub.s32 %s17, %s24
    %p251 = scmp.eq.s32.totalorder %s250, 0
    %s253 = sadd.s32 %s252, 1
    %s254 = scalar_select %p251, %s252, %s253
    %p257 = pneg %p251
    %p258 = scmp.eq.s32.totalorder %s17, 1
    %p259 = por %p257, %p258
    %p260 = scmp.ne.s32.totalorder %s252, %s255
    %p261 = scmp.eq.s32.totalorder %s17, 0
    %p262 = por %p260, %p261
    %p263 = scmp.ne.s32.totalorder %s252, %s255
    %p264 = scmp.eq.s32.totalorder %s22, 1
    %p265 = por %p263, %p264
    %p266 = scmp.ne.s32.totalorder %s255, %s256
    %p267 = scmp.eq.s32.totalorder %s22, 0
    %p268 = por %p266, %p267
    %p269 = scmp.ne.s32.totalorder %s255, %s256
    %p270 = scmp.eq.s32.totalorder %s23, 1
    %p271 = por %p269, %p270
    %p273 = scmp.ne.s32.totalorder %s256, %s272
    %p274 = scmp.eq.s32.totalorder %s23, 0
    %p275 = por %p273, %p274
    %p276 = scmp.le.s32.totalorder 1, %s17
    %p277 = scmp.lt.s32.totalorder %s17, 3
    %p278 = pnand %p276, %p277
    %p279 = pneg %p278
    // Predicated region
    $region9: #{up_forward.3} parent=5 // pred_check
      _
    $region10: #{up_forward.3} parent=5 // pred_check_branch
      %281 = sbr.rel (%p278) target = $region12
    $region11: #{up_forward.3} parent=5 // pred_region
      %s282 = ssub.s32 %s17, 1
      // Predicated region
      $region13: #{up_forward.3} parent=11 // pred_check
        %p283 = pneg %p90
      $region14: #{up_forward.3} parent=11 // pred_check_branch
        %285 = sbr.rel (%p283) target = $region16
      $region15: #{up_forward.3} parent=11 // pred_region
        _
      $region16: #{up_forward.3} parent=11 // pred_fallthru
        _
      // Predicated region
      $region17: #{up_forward.3} parent=11 // pred_check
        %p286 = pneg %p111
      $region18: #{up_forward.3} parent=11 // pred_check_branch
        %288 = sbr.rel (%p286) target = $region20
      $region19: #{up_forward.3} parent=11 // pred_region
        _
      $region20: #{up_forward.3} parent=11 // pred_fallthru
        _
      // Predicated region
      $region21: #{up_forward.3} parent=11 // pred_check
        %p289 = pneg %p132
      $region22: #{up_forward.3} parent=11 // pred_check_branch
        %291 = sbr.rel (%p289) target = $region24
      $region23: #{up_forward.3} parent=11 // pred_region
        _
      $region24: #{up_forward.3} parent=11 // pred_fallthru
        _
      // Predicated region
      $region25: #{up_forward.3} parent=11 // pred_check
        %p292 = pneg %p153
      $region26: #{up_forward.3} parent=11 // pred_check_branch
        %294 = sbr.rel (%p292) target = $region28
      $region27: #{up_forward.3} parent=11 // pred_region
        _
      $region28: #{up_forward.3} parent=11 // pred_fallthru
        _
      // Predicated region
      $region29: #{up_forward.3} parent=11 // pred_check
        %p295 = pneg %p174
      $region30: #{up_forward.3} parent=11 // pred_check_branch
        %297 = sbr.rel (%p295) target = $region32
      $region31: #{up_forward.3} parent=11 // pred_region
        _
      $region32: #{up_forward.3} parent=11 // pred_fallthru
        _
      // Predicated region
      $region33: #{up_forward.3} parent=11 // pred_check
        %p298 = pneg %p195
      $region34: #{up_forward.3} parent=11 // pred_check_branch
        %300 = sbr.rel (%p298) target = $region36
      $region35: #{up_forward.3} parent=11 // pred_region
        _
      $region36: #{up_forward.3} parent=11 // pred_fallthru
        _
      // Predicated region
      $region37: #{up_forward.3} parent=11 // pred_check
        %p301 = pneg %p216
      $region38: #{up_forward.3} parent=11 // pred_check_branch
        %303 = sbr.rel (%p301) target = $region40
      $region39: #{up_forward.3} parent=11 // pred_region
        _
      $region40: #{up_forward.3} parent=11 // pred_fallthru
        _
    $region12: #{up_forward.3} parent=5 // pred_fallthru
      _
    %p304 = scmp.lt.s32.totalorder %s17, 2
    // Predicated region
    $region41: #{up_forward.3} parent=5 // pred_check
      %p305 = pneg %p304
    $region42: #{up_forward.3} parent=5 // pred_check_branch
      %307 = sbr.rel (%p305) target = $region44
    $region43: #{up_forward.3} parent=5 // pred_region
      // Predicated region
      $region45: #{up_forward.3} parent=43 // pred_check
        %p308 = pneg %p37
      $region46: #{up_forward.3} parent=43 // pred_check_branch
        %310 = sbr.rel (%p308) target = $region48
      $region47: #{up_forward.3} parent=43 // pred_region
        %p311 = scmp.lt.s32.totalorder %s17, 1
        %s312 = scalar_select %p311, %s17, 1
        %s313 = smul.addr %s312, 8
        %s314 = scalar_lea.vmem %s0, %s313
      $region48: #{up_forward.3} parent=43 // pred_fallthru
        _
      // Predicated region
      $region49: #{up_forward.3} parent=43 // pred_check
        %p315 = pneg %p63
      $region50: #{up_forward.3} parent=43 // pred_check_branch
        %317 = sbr.rel (%p315) target = $region52
      $region51: #{up_forward.3} parent=43 // pred_region
        %p318 = scmp.lt.s32.totalorder %s17, 1
        %s319 = scalar_select %p318, %s17, 1
        %s320 = smul.addr %s319, 4
        %s321 = scalar_lea.vmem %s1, %s320
      $region52: #{up_forward.3} parent=43 // pred_fallthru
        _
    $region44: #{up_forward.3} parent=5 // pred_fallthru
      _
    %p322 = scmp.le.s32.totalorder 1, %s17
    %p323 = scmp.lt.s32.totalorder %s17, 3
    %p324 = pnand %p322, %p323
    %p325 = pneg %p324
    // Predicated region
    $region53: #{up_forward.3} parent=5 // pred_check
      _
    $region54: #{up_forward.3} parent=5 // pred_check_branch
      %327 = sbr.rel (%p324) target = $region56
    $region55: #{up_forward.3} parent=5 // pred_region
      %s328 = ssub.s32 %s17, 1
      %p329 = scmp.lt.s32.totalorder %s22, 1
      %s330 = scalar_select %p329, %s22, 1
      %s331 = smul.addr %s330, 8
      %s332 = scalar_lea.vmem %s0, %s331
      %p333 = pneg %p43
      %p334 = pneg %p40
      %p335 = scmp.lt.s32.totalorder %s22, 1
      %s336 = scalar_select %p335, %s22, 1
      %s337 = smul.addr %s336, 4
      %s338 = scalar_lea.vmem %s1, %s337
      %p339 = pneg %p69
      %p340 = pneg %p66
      %p341 = pneg %p90
      %p342 = pneg %p87
      %p343 = pneg %p111
      %p344 = pneg %p108
      %p345 = pneg %p132
      %p346 = pneg %p129
      %p347 = pneg %p153
      %p348 = pneg %p150
      %p349 = pneg %p174
      %p350 = pneg %p171
      %p351 = pneg %p195
      %p352 = pneg %p192
      %p353 = pneg %p216
      %p354 = pneg %p213
      %p355 = pneg %p242
      %p356 = pneg %p239
      %p357 = scmp.lt.s32.totalorder %s22, 1
      %s358 = scalar_select %p357, %s22, 1
      %s359 = smul.addr %s358, 2
      %s360 = smul.addr %s359, 4
      %s361 = scalar_lea.vmem %s9, %s360
      %p362 = pneg %p268
      %p363 = pneg %p265
      %p364 = scmp.lt.s32.totalorder %s22, 1
      %s365 = scalar_select %p364, %s22, 1
      %s366 = smul.addr %s365, 2
      %s367 = scalar_lea.vmem %s10, %s366
      %p368 = scmp.lt.s32.totalorder %s22, 1
      %s369 = scalar_select %p368, %s22, 1
      %s370 = smul.addr %s369, 8
      %s371 = scalar_lea.vmem %s0, %s370
      %p372 = scmp.lt.s32.totalorder %s22, 1
      %s373 = scalar_select %p372, %s22, 1
      %s374 = smul.addr %s373, 4
      %s375 = scalar_lea.vmem %s1, %s374
      %p376 = scmp.lt.s32.totalorder %s22, 1
      %s377 = scalar_select %p376, %s22, 1
      %s378 = smul.addr %s377, 2
      %s379 = smul.addr %s378, 4
      %s380 = scalar_lea.vmem %s9, %s379
      %p381 = scmp.lt.s32.totalorder %s22, 1
      %s382 = scalar_select %p381, %s22, 1
      %s383 = smul.addr %s382, 2
      %s384 = scalar_lea.vmem %s10, %s383
      %v386 = vld [vmem:[%s371] sm:$0xff]
      %387 = vxpose.xlu0.b32.start [1/16] %v386, 128
      %388 = vxpose.xlu0.b32.cont [2/16] 0.0, 128
      %389 = vxpose.xlu0.b32.cont [3/16] 0.0, 128
      %390 = vxpose.xlu0.b32.cont [4/16] 0.0, 128
      %391 = vxpose.xlu0.b32.cont [5/16] 0.0, 128
      %392 = vxpose.xlu0.b32.cont [6/16] 0.0, 128
      %393 = vxpose.xlu0.b32.cont [7/16] 0.0, 128
      %394 = vxpose.xlu0.b32.cont [8/16] 0.0, 128
      %395 = vxpose.xlu0.b32.cont [9/16] 0.0, 128
      %396 = vxpose.xlu0.b32.cont [10/16] 0.0, 128
      %397 = vxpose.xlu0.b32.cont [11/16] 0.0, 128
      %398 = vxpose.xlu0.b32.cont [12/16] 0.0, 128
      %399 = vxpose.xlu0.b32.cont [13/16] 0.0, 128
      %400 = vxpose.xlu0.b32.cont [14/16] 0.0, 128
      %401 = vxpose.xlu0.b32.cont [15/16] 0.0, 128
      %402 = vxpose.xlu0.b32.end [16/16] 0.0, 128
      %v403 = vpop.trf.xlu0
      %v404 = vpop.trf.xlu0
      %v405 = vpop.trf.xlu0
      %v406 = vpop.trf.xlu0
      %v407 = vpop.trf.xlu0
      %v408 = vpop.trf.xlu0
      %v409 = vpop.trf.xlu0
      %v410 = vpop.trf.xlu0
      %v411 = vpop.trf.xlu0
      %v412 = vpop.trf.xlu0
      %v413 = vpop.trf.xlu0
      %v414 = vpop.trf.xlu0
      %v415 = vpop.trf.xlu0
      %v416 = vpop.trf.xlu0
      %v417 = vpop.trf.xlu0
      %v418 = vpop.trf.xlu0
      %v419 = vpack.c.bf16 %v403, %v403
      %v420 = vld [vmem:[%s2] sm:$0xf]
      %v421 = vld [vmem:[%s4] sm:$0x1]
      %v423 = vlaneseq
      %v424 = vshrl.u32 %v423, 7
      %v425 = vsub.s32 0, %v424
      %v426 = vrot.slane %v421, %v425
      %vm428 = vcmask 64512
      %v430 = vsel %vm428, %v419, 0
      %vm432 = vcmask 1043456
      %v434 = vsel %vm432, %v420, 0
      %436 = vmatprep.subr.bf16.mxu0 0
      %437 = vmatpush1.bf16.msra.mxu0 %v434
      %438 = vmatprep.subr.bf16.mxu0 0
      %439 = vmatpush1.bf16.msra.mxu0 0
      %440 = vmatprep.subr.bf16.mxu0 0
      %441 = vmatpush1.bf16.msra.mxu0 0
      %442 = vmatprep.subr.bf16.mxu0 0
      %443 = vmatpush1.bf16.msra.mxu0 0
      %444 = vmatprep.subr.bf16.mxu0 0
      %445 = vmatpush1.bf16.msra.mxu0 0
      %446 = vmatprep.subr.bf16.mxu0 0
      %447 = vmatpush1.bf16.msra.mxu0 0
      %448 = vmatprep.subr.bf16.mxu0 0
      %449 = vmatpush1.bf16.msra.mxu0 0
      %450 = vmatprep.subr.bf16.mxu0 0
      %451 = vmatpush1.bf16.msra.mxu0 0
      %452 = vmatprep.subr.bf16.mxu0 0
      %453 = vmatpush1.bf16.msra.mxu0 0
      %454 = vmatprep.subr.bf16.mxu0 0
      %455 = vmatpush1.bf16.msra.mxu0 0
      %456 = vmatprep.subr.bf16.mxu0 0
      %457 = vmatpush1.bf16.msra.mxu0 0
      %458 = vmatprep.subr.bf16.mxu0 0
      %459 = vmatpush1.bf16.msra.mxu0 0
      %460 = vmatprep.subr.bf16.mxu0 0
      %461 = vmatpush1.bf16.msra.mxu0 0
      %462 = vmatprep.subr.bf16.mxu0 0
      %463 = vmatpush1.bf16.msra.mxu0 0
      %464 = vmatprep.subr.bf16.mxu0 0
      %465 = vmatpush1.bf16.msra.mxu0 0
      %466 = vmatprep.subr.bf16.mxu0 0
      %467 = vmatpush1.bf16.msra.mxu0 0
      %468 = vmatprep.mubr.bf16.mxu0 0
      %469 = vmatmul.mubr.bf16.gmra.mrb[0].mxu0 %v430
      %v470 = vpop.f32.mrb[0].mxu0
      %v471 = vadd.f32 %v426, %v470
      %v472 = vpop.f32.mrb[0].mxu0
      %v473 = vpop.f32.mrb[0].mxu0
      %v474 = vpop.f32.mrb[0].mxu0
      %475 = vdwg.mxu0
      %v476 = vpack.c.bf16 %v471, %v471
      %v477 = vld [vmem:[%s3] sm:$0xf]
      %v479 = vsel %vm432, %v477, 0
      %481 = vmatprep.subr.bf16.mxu0 0
      %482 = vmatpush1.bf16.msra.mxu0 %v479
      %483 = vmatprep.subr.bf16.mxu0 0
      %484 = vmatpush1.bf16.msra.mxu0 0
      %485 = vmatprep.subr.bf16.mxu0 0
      %486 = vmatpush1.bf16.msra.mxu0 0
      %487 = vmatprep.subr.bf16.mxu0 0
      %488 = vmatpush1.bf16.msra.mxu0 0
      %489 = vmatprep.subr.bf16.mxu0 0
      %490 = vmatpush1.bf16.msra.mxu0 0
      %491 = vmatprep.subr.bf16.mxu0 0
      %492 = vmatpush1.bf16.msra.mxu0 0
      %493 = vmatprep.subr.bf16.mxu0 0
      %494 = vmatpush1.bf16.msra.mxu0 0
      %495 = vmatprep.subr.bf16.mxu0 0
      %496 = vmatpush1.bf16.msra.mxu0 0
      %497 = vmatprep.subr.bf16.mxu0 0
      %498 = vmatpush1.bf16.msra.mxu0 0
      %499 = vmatprep.subr.bf16.mxu0 0
      %500 = vmatpush1.bf16.msra.mxu0 0
      %501 = vmatprep.subr.bf16.mxu0 0
      %502 = vmatpush1.bf16.msra.mxu0 0
      %503 = vmatprep.subr.bf16.mxu0 0
      %504 = vmatpush1.bf16.msra.mxu0 0
      %505 = vmatprep.subr.bf16.mxu0 0
      %506 = vmatpush1.bf16.msra.mxu0 0
      %507 = vmatprep.subr.bf16.mxu0 0
      %508 = vmatpush1.bf16.msra.mxu0 0
      %509 = vmatprep.subr.bf16.mxu0 0
      %510 = vmatpush1.bf16.msra.mxu0 0
      %511 = vmatprep.subr.bf16.mxu0 0
      %512 = vmatpush1.bf16.msra.mxu0 0
      %513 = vmatprep.mubr.bf16.mxu0 0
      %514 = vmatmul.mubr.bf16.gmra.mrb[0].mxu0 %v430
      %v515 = vpop.f32.mrb[0].mxu0
      %v516 = vadd.f32 %v426, %v515
      %v517 = vpop.f32.mrb[0].mxu0
      %v518 = vpop.f32.mrb[0].mxu0
      %v519 = vpop.f32.mrb[0].mxu0
      %520 = vdwg.mxu0
      %v521 = vpack.c.bf16 %v516, %v516
      %v522 = vld [vmem:[%s5] sm:$0xf]
      %v523 = vld [vmem:[%s5 + $0x4] sm:$0xf]
      %v524 = vld [vmem:[%s6] sm:$0xf]
      %v525 = vld [vmem:[%s6 + $0x4] sm:$0xf]
      %v528 = vunpack.c.l.b16 %v524
      %v529 = vunpack.c.l.b16 %v525
      %v530 = vpack.c.b16 %v529, %v528
      %v532 = vsel %vm428, %v530, 0
      %v535 = vsel %vm432, %v521, 0
      %537 = vmatprep.subr.bf16.mxu0 0
      %538 = vmatpush1.bf16.msra.mxu0 %v535
      %539 = vmatprep.subr.bf16.mxu0 0
      %540 = vmatpush1.bf16.msra.mxu0 0
      %541 = vmatprep.subr.bf16.mxu0 0
      %542 = vmatpush1.bf16.msra.mxu0 0
      %543 = vmatprep.subr.bf16.mxu0 0
      %544 = vmatpush1.bf16.msra.mxu0 0
      %545 = vmatprep.subr.bf16.mxu0 0
      %546 = vmatpush1.bf16.msra.mxu0 0
      %547 = vmatprep.subr.bf16.mxu0 0
      %548 = vmatpush1.bf16.msra.mxu0 0
      %549 = vmatprep.subr.bf16.mxu0 0
      %550 = vmatpush1.bf16.msra.mxu0 0
      %551 = vmatprep.subr.bf16.mxu0 0
      %552 = vmatpush1.bf16.msra.mxu0 0
      %553 = vmatprep.subr.bf16.mxu0 0
      %554 = vmatpush1.bf16.msra.mxu0 0
      %555 = vmatprep.subr.bf16.mxu0 0
      %556 = vmatpush1.bf16.msra.mxu0 0
      %557 = vmatprep.subr.bf16.mxu0 0
      %558 = vmatpush1.bf16.msra.mxu0 0
      %559 = vmatprep.subr.bf16.mxu0 0
      %560 = vmatpush1.bf16.msra.mxu0 0
      %561 = vmatprep.subr.bf16.mxu0 0
      %562 = vmatpush1.bf16.msra.mxu0 0
      %563 = vmatprep.subr.bf16.mxu0 0
      %564 = vmatpush1.bf16.msra.mxu0 0
      %565 = vmatprep.subr.bf16.mxu0 0
      %566 = vmatpush1.bf16.msra.mxu0 0
      %567 = vmatprep.subr.bf16.mxu0 0
      %568 = vmatpush1.bf16.msra.mxu0 0
      %569 = vmatprep.mubr.bf16.mxu0 0
      %570 = vmatmul.mubr.bf16.gmra.mrb[0].mxu0 %v532
      %v571 = vpop.f32.mrb[0].mxu0
      %v572 = vadd.f32 0.0, %v571
      %v573 = vpop.f32.mrb[0].mxu0
      %v574 = vpop.f32.mrb[0].mxu0
      %v575 = vadd.f32 0.0, %v574
      %v576 = vpop.f32.mrb[0].mxu0
      %577 = vdwg.mxu0
      %v580 = vunpack.c.l.b16 %v522
      %v581 = vunpack.c.l.b16 %v523
      %v582 = vpack.c.b16 %v581, %v580
      %v584 = vsel %vm428, %v582, 0
      %v587 = vsel %vm432, %v476, 0
      %589 = vmatprep.subr.bf16.mxu0 0
      %590 = vmatpush1.bf16.msra.mxu0 %v587
      %591 = vmatprep.subr.bf16.mxu0 0
      %592 = vmatpush1.bf16.msra.mxu0 0
      %593 = vmatprep.subr.bf16.mxu0 0
      %594 = vmatpush1.bf16.msra.mxu0 0
      %595 = vmatprep.subr.bf16.mxu0 0
      %596 = vmatpush1.bf16.msra.mxu0 0
      %597 = vmatprep.subr.bf16.mxu0 0
      %598 = vmatpush1.bf16.msra.mxu0 0
      %599 = vmatprep.subr.bf16.mxu0 0
      %600 = vmatpush1.bf16.msra.mxu0 0
      %601 = vmatprep.subr.bf16.mxu0 0
      %602 = vmatpush1.bf16.msra.mxu0 0
      %603 = vmatprep.subr.bf16.mxu0 0
      %604 = vmatpush1.bf16.msra.mxu0 0
      %605 = vmatprep.subr.bf16.mxu0 0
      %606 = vmatpush1.bf16.msra.mxu0 0
      %607 = vmatprep.subr.bf16.mxu0 0
      %608 = vmatpush1.bf16.msra.mxu0 0
      %609 = vmatprep.subr.bf16.mxu0 0
      %610 = vmatpush1.bf16.msra.mxu0 0
      %611 = vmatprep.subr.bf16.mxu0 0
      %612 = vmatpush1.bf16.msra.mxu0 0
      %613 = vmatprep.subr.bf16.mxu0 0
      %614 = vmatpush1.bf16.msra.mxu0 0
      %615 = vmatprep.subr.bf16.mxu0 0
      %616 = vmatpush1.bf16.msra.mxu0 0
      %617 = vmatprep.subr.bf16.mxu0 0
      %618 = vmatpush1.bf16.msra.mxu0 0
      %619 = vmatprep.subr.bf16.mxu0 0
      %620 = vmatpush1.bf16.msra.mxu0 0
      %621 = vmatprep.mubr.bf16.mxu0 0
      %622 = vmatmul.mubr.bf16.gmra.mrb[0].mxu0 %v584
      %v623 = vpop.f32.mrb[0].mxu0
      %v624 = vadd.f32 %v572, %v623
      %v625 = vpop.f32.mrb[0].mxu0
      %v626 = vpop.f32.mrb[0].mxu0
      %v627 = vadd.f32 %v575, %v626
      %v628 = vpop.f32.mrb[0].mxu0
      %629 = vdwg.mxu0
      %v630 = vld [vmem:[%s375] sm:$0xf]
      %631 = vxpose.xlu0.b32.start [1/16] %v630, 128
      %632 = vxpose.xlu0.b32.cont [2/16] 0.0, 128
      %633 = vxpose.xlu0.b32.cont [3/16] 0.0, 128
      %634 = vxpose.xlu0.b32.cont [4/16] 0.0, 128
      %635 = vxpose.xlu0.b32.cont [5/16] 0.0, 128
      %636 = vxpose.xlu0.b32.cont [6/16] 0.0, 128
      %637 = vxpose.xlu0.b32.cont [7/16] 0.0, 128
      %638 = vxpose.xlu0.b32.cont [8/16] 0.0, 128
      %639 = vxpose.xlu0.b32.cont [9/16] 0.0, 128
      %640 = vxpose.xlu0.b32.cont [10/16] 0.0, 128
      %641 = vxpose.xlu0.b32.cont [11/16] 0.0, 128
      %642 = vxpose.xlu0.b32.cont [12/16] 0.0, 128
      %643 = vxpose.xlu0.b32.cont [13/16] 0.0, 128
      %644 = vxpose.xlu0.b32.cont [14/16] 0.0, 128
      %645 = vxpose.xlu0.b32.cont [15/16] 0.0, 128
      %646 = vxpose.xlu0.b32.end [16/16] 0.0, 128
      %v647 = vpop.trf.xlu0
      %v648 = vpop.trf.xlu0
      %v649 = vpop.trf.xlu0
      %v650 = vpop.trf.xlu0
      %v651 = vpop.trf.xlu0
      %v652 = vpop.trf.xlu0
      %v653 = vpop.trf.xlu0
      %v654 = vpop.trf.xlu0
      %v655 = vpop.trf.xlu0
      %v656 = vpop.trf.xlu0
      %v657 = vpop.trf.xlu0
      %v658 = vpop.trf.xlu0
      %v659 = vpop.trf.xlu0
      %v660 = vpop.trf.xlu0
      %v661 = vpop.trf.xlu0
      %v662 = vpop.trf.xlu0
      %v663 = vpack.c.bf16 %v648, %v647
      %v664 = vpack.c.bf16 %v627, %v624
      %v665 = vld [vmem:[%s7] sm:$0x3]
      %v666 = vld [vmem:[%s8] sm:$0x3]
      %vm667 = vcmask 31744
      %v669 = vsel %vm667, %v664, 0
      %vm671 = vcmask 1041408
      %v673 = vsel %vm671, %v666, 0
      %675 = vmatprep.subr.bf16.mxu0 0
      %676 = vmatpush1.bf16.msra.mxu0 %v673
      %677 = vmatprep.subr.bf16.mxu0 0
      %678 = vmatpush1.bf16.msra.mxu0 0
      %679 = vmatprep.subr.bf16.mxu0 0
      %680 = vmatpush1.bf16.msra.mxu0 0
      %681 = vmatprep.subr.bf16.mxu0 0
      %682 = vmatpush1.bf16.msra.mxu0 0
      %683 = vmatprep.subr.bf16.mxu0 0
      %684 = vmatpush1.bf16.msra.mxu0 0
      %685 = vmatprep.subr.bf16.mxu0 0
      %686 = vmatpush1.bf16.msra.mxu0 0
      %687 = vmatprep.subr.bf16.mxu0 0
      %688 = vmatpush1.bf16.msra.mxu0 0
      %689 = vmatprep.subr.bf16.mxu0 0
      %690 = vmatpush1.bf16.msra.mxu0 0
      %691 = vmatprep.subr.bf16.mxu0 0
      %692 = vmatpush1.bf16.msra.mxu0 0
      %693 = vmatprep.subr.bf16.mxu0 0
      %694 = vmatpush1.bf16.msra.mxu0 0
      %695 = vmatprep.subr.bf16.mxu0 0
      %696 = vmatpush1.bf16.msra.mxu0 0
      %697 = vmatprep.subr.bf16.mxu0 0
      %698 = vmatpush1.bf16.msra.mxu0 0
      %699 = vmatprep.subr.bf16.mxu0 0
      %700 = vmatpush1.bf16.msra.mxu0 0
      %701 = vmatprep.subr.bf16.mxu0 0
      %702 = vmatpush1.bf16.msra.mxu0 0
      %703 = vmatprep.subr.bf16.mxu0 0
      %704 = vmatpush1.bf16.msra.mxu0 0
      %705 = vmatprep.subr.bf16.mxu0 0
      %706 = vmatpush1.bf16.msra.mxu0 0
      %707 = vmatprep.mubr.bf16.mxu0 0
      %708 = vmatmul.mubr.bf16.gmra.mrb[0].mxu0 %v669
      %v709 = vpop.f32.mrb[0].mxu0
      %v710 = vadd.f32 0.0, %v709
      %v711 = vpop.f32.mrb[0].mxu0
      %v712 = vpop.f32.mrb[0].mxu0
      %v713 = vadd.f32 0.0, %v712
      %v714 = vpop.f32.mrb[0].mxu0
      %715 = vdwg.mxu0
      %v717 = vsel %vm667, %v663, 0
      %v720 = vsel %vm671, %v665, 0
      %722 = vmatprep.subr.bf16.mxu0 0
      %723 = vmatpush1.bf16.msra.mxu0 %v720
      %724 = vmatprep.subr.bf16.mxu0 0
      %725 = vmatpush1.bf16.msra.mxu0 0
      %726 = vmatprep.subr.bf16.mxu0 0
      %727 = vmatpush1.bf16.msra.mxu0 0
      %728 = vmatprep.subr.bf16.mxu0 0
      %729 = vmatpush1.bf16.msra.mxu0 0
      %730 = vmatprep.subr.bf16.mxu0 0
      %731 = vmatpush1.bf16.msra.mxu0 0
      %732 = vmatprep.subr.bf16.mxu0 0
      %733 = vmatpush1.bf16.msra.mxu0 0
      %734 = vmatprep.subr.bf16.mxu0 0
      %735 = vmatpush1.bf16.msra.mxu0 0
      %736 = vmatprep.subr.bf16.mxu0 0
      %737 = vmatpush1.bf16.msra.mxu0 0
      %738 = vmatprep.subr.bf16.mxu0 0
      %739 = vmatpush1.bf16.msra.mxu0 0
      %740 = vmatprep.subr.bf16.mxu0 0
      %741 = vmatpush1.bf16.msra.mxu0 0
      %742 = vmatprep.subr.bf16.mxu0 0
      %743 = vmatpush1.bf16.msra.mxu0 0
      %744 = vmatprep.subr.bf16.mxu0 0
      %745 = vmatpush1.bf16.msra.mxu0 0
      %746 = vmatprep.subr.bf16.mxu0 0
      %747 = vmatpush1.bf16.msra.mxu0 0
      %748 = vmatprep.subr.bf16.mxu0 0
      %749 = vmatpush1.bf16.msra.mxu0 0
      %750 = vmatprep.subr.bf16.mxu0 0
      %751 = vmatpush1.bf16.msra.mxu0 0
      %752 = vmatprep.subr.bf16.mxu0 0
      %753 = vmatpush1.bf16.msra.mxu0 0
      %754 = vmatprep.mubr.bf16.mxu0 0
      %755 = vmatmul.mubr.bf16.gmra.mrb[0].mxu0 %v717
      %v756 = vpop.f32.mrb[0].mxu0
      %v757 = vadd.f32 %v710, %v756
      %v758 = vpop.f32.mrb[0].mxu0
      %v759 = vpop.f32.mrb[0].mxu0
      %v760 = vadd.f32 %v713, %v759
      %v761 = vpop.f32.mrb[0].mxu0
      %762 = vdwg.mxu0
      %vm765 = vcmask 1040384
      %v766 = vrot.slane %v757, 7
      %v767 = vrot.slane %v760, 7
      %v768 = vsel %vm765, %v766, %v767
      %v771 = vsel %vm765, 0.0, %v766
      %772 = vrot.lane.b32.xlu0 %v757, 124
      %v773 = vpop.permute.xlu0 %772
      %774 = vrot.lane.b32.xlu0 %v760, 124
      %v775 = vpop.permute.xlu0 %774
      %v778 = vadd.f32 %v771, %v773
      %v779 = vadd.f32 %v768, %v775
      %vm780 = vcmask 1046528
      %v781 = vrot.slane %v757, 1
      %v782 = vrot.slane %v760, 1
      %v783 = vsel %vm780, %v781, %v782
      %v785 = vsel %vm780, %v782, 0.0
      %787 = vrot.lane.b32.xlu0 %v783, 120
      %v788 = vpop.permute.xlu0 %787
      %789 = vrot.lane.b32.xlu0 %v785, 120
      %v790 = vpop.permute.xlu0 %789
      %v793 = vadd.f32 %v778, %v788
      %v794 = vadd.f32 %v779, %v790
      %v795 = vpack.c.bf16 %v794, %v793
      %v797 = vunpack.c.l.b16 %v795
      %v798 = vunpack.c.h.b16 %v795
      %v799 = vpack.c.b16 %v797, %v797
      %v800 = vpack.c.b16 %v798, %v798
      %vm803 = vcmask 27648
      %804 = vst.msk [vmem:[%s380] sm:$0xf] %vm803, %v799
      %805 = vst.msk [vmem:[%s380 + $0x4] sm:$0xf] %vm803, %v800
      %v806 = vunpack.c.l.bf16 %v795
      %v807 = vunpack.c.h.bf16 %v795
      %v808 = vsel %vm667, %v806, 0.0
      %v809 = vsel %vm667, %v807, 0.0
      %v810 = vadd.f32 %v808, %v809
      %v811 = vrot.slane %v810, 4
      %v812 = vadd.f32 %v810, %v811
      %v813 = vrot.slane %v812, 2
      %v814 = vadd.f32 %v812, %v813
      %v815 = vrot.slane %v814, 1
      %v816 = vadd.f32 %v814, %v815
      %v817 = vmul.f32 %v806, %v806
      %v818 = vmul.f32 %v807, %v807
      %v819 = vsel %vm667, %v817, 0.0
      %v820 = vsel %vm667, %v818, 0.0
      %v821 = vadd.f32 %v819, %v820
      %v822 = vrot.slane %v821, 4
      %v823 = vadd.f32 %v821, %v822
      %v824 = vrot.slane %v823, 2
      %v825 = vadd.f32 %v823, %v824
      %v826 = vrot.slane %v825, 1
      %v827 = vadd.f32 %v825, %v826
      %v828 = vsel %vm765, %v816, %v827
      %vm829 = vcmask 25600
      %830 = vst.msk [vmem:[%s384] sm:$0x3] %vm829, %v828
      %p831 = scmp.lt.s32.totalorder %s22, 1
      %s832 = scalar_select %p831, %s22, 1
      %s833 = smul.addr %s832, 2
      %s834 = smul.addr %s833, 4
      %s835 = scalar_lea.vmem %s9, %s834
      %p836 = scmp.lt.s32.totalorder %s22, 1
      %s837 = scalar_select %p836, %s22, 1
      %s838 = smul.addr %s837, 2
      %s839 = scalar_lea.vmem %s10, %s838
      // Predicated region
      $region57: #{up_forward.3} parent=55 // pred_check
        %p840 = pneg %p239
      $region58: #{up_forward.3} parent=55 // pred_check_branch
        %842 = sbr.rel (%p840) target = $region60
      $region59: #{up_forward.3} parent=55 // pred_region
        _
      $region60: #{up_forward.3} parent=55 // pred_fallthru
        _
      // Predicated region
      $region61: #{up_forward.3} parent=55 // pred_check
        %p843 = pneg %p265
      $region62: #{up_forward.3} parent=55 // pred_check_branch
        %845 = sbr.rel (%p843) target = $region64
      $region63: #{up_forward.3} parent=55 // pred_region
        _
      $region64: #{up_forward.3} parent=55 // pred_fallthru
        _
    $region56: #{up_forward.3} parent=5 // pred_fallthru
      _
    %p846 = scmp.le.s32.totalorder 2, %s17
    // Predicated region
    $region65: #{up_forward.3} parent=5 // pred_check
      %p847 = pneg %p846
    $region66: #{up_forward.3} parent=5 // pred_check_branch
      %849 = sbr.rel (%p847) target = $region68
    $region67: #{up_forward.3} parent=5 // pred_region
      %s850 = ssub.s32 %s17, 2
      // Predicated region
      $region69: #{up_forward.3} parent=67 // pred_check
        %p851 = pneg %p245
      $region70: #{up_forward.3} parent=67 // pred_check_branch
        %853 = sbr.rel (%p851) target = $region72
      $region71: #{up_forward.3} parent=67 // pred_region
        %p854 = scmp.lt.s32.totalorder %s23, 1
        %s855 = scalar_select %p854, %s23, 1
        %s856 = smul.addr %s855, 2
        %s857 = smul.addr %s856, 4
        %s858 = scalar_lea.vmem %s9, %s857
      $region72: #{up_forward.3} parent=67 // pred_fallthru
        _
      // Predicated region
      $region73: #{up_forward.3} parent=67 // pred_check
        %p859 = pneg %p271
      $region74: #{up_forward.3} parent=67 // pred_check_branch
        %861 = sbr.rel (%p859) target = $region76
      $region75: #{up_forward.3} parent=67 // pred_region
        %p862 = scmp.lt.s32.totalorder %s23, 1
        %s863 = scalar_select %p862, %s23, 1
        %s864 = smul.addr %s863, 2
        %s865 = scalar_lea.vmem %s10, %s864
      $region76: #{up_forward.3} parent=67 // pred_fallthru
        _
    $region68: #{up_forward.3} parent=5 // pred_fallthru
      _
  $region6: #{up_forward.3} parent=0 // loop_footer
    %s21 = sadd.s32 1, %s17
  $region7: #{up_forward.3} parent=0 // loop_footer_branch
    %16 = sbr.rel target = $region3
  $region8: #{up_forward.3} parent=0 // loop_exit
    _

</llo_original>
